<compile_context>
chip_gen: v7x
topology: tpu7x:2x2x1
jax: 0.10.0
libtpu: 0.0.40
codegen_flags: <defaults>
</compile_context>

<pallas_src>
import jax
import jax.numpy as jnp
from jax.experimental import pallas as pl
from jax.experimental.pallas import tpu as pltpu

HP = 128  # padded hidden size: every gate block starts on a 128-lane boundary


def lstm_last_linear_kernel(x_ref, wih_ref, whh_ref, b_ref, wout_ref, bout_ref, out_ref):
    """Full LSTM recurrence + last-step linear projection, entirely in VMEM.

    x_ref    : (B, T*I)   f32, batch-major flattened inputs (row b, lanes t*I..t*I+I-1)
    wih_ref  : (I, 4*Hp)  bf16, gate order [i, f, o, g], per-gate zero-padded
    whh_ref  : (Hp, 4*Hp) bf16, gate order [i, f, o, g], per-gate zero-padded
    b_ref    : (1, 4*Hp)  f32  (b_ih + b_hh), gate order [i, f, o, g]
    wout_ref : (Hp, O)    bf16
    bout_ref : (1, O)     f32
    out_ref  : (B, O)     f32
    """
    B = out_ref.shape[0]
    I = wih_ref.shape[0]
    T = x_ref.shape[1] // I
    Hp = whh_ref.shape[0]

    wih = wih_ref[...]            # bf16 (I, 4Hp)
    whh = whh_ref[...]            # bf16 (Hp, 4Hp)
    b = b_ref[...]                # f32  (1, 4Hp)

    # Input projection, hoisted off the serial chain: T independent tiny dots
    # (bf16 operands, f32 accumulation). Each x slice is a static lane slice of the
    # (B, T*I) input -> no external transpose, no in-kernel reshape.
    xg = [
        jnp.dot(x_ref[:, t * I:(t + 1) * I].astype(jnp.bfloat16), wih,
                preferred_element_type=jnp.float32) + b
        for t in range(T)
    ]

    h = jnp.zeros((B, Hp), jnp.float32)
    c = jnp.zeros((B, Hp), jnp.float32)

    # Fully unrolled recurrence (T is small & static) -> scheduler sees every step.
    for t in range(T):
        gates = xg[t] + jnp.dot(h.astype(jnp.bfloat16), whh,
                                preferred_element_type=jnp.float32)   # (B, 4Hp), [i,f,o,g]

        # sigmoid(x) == 0.5*tanh(0.5*x) + 0.5 (exact): one EUP tanh covers i, f, o.
        sig = 0.5 * jnp.tanh(0.5 * gates[:, :3 * Hp]) + 0.5
        i_g = sig[:, 0 * Hp:1 * Hp]
        f_g = sig[:, 1 * Hp:2 * Hp]
        o_g = sig[:, 2 * Hp:3 * Hp]
        g_g = jnp.tanh(gates[:, 3 * Hp:4 * Hp])

        c = f_g * c + i_g * g_g
        h = o_g * jnp.tanh(c)

    # Final projection of the last hidden state (bf16 operands, f32 accumulate).
    out_ref[...] = (
        jnp.dot(h.astype(jnp.bfloat16), wout_ref[...],
                preferred_element_type=jnp.float32) + bout_ref[...]
    )


def model_forward(x, params):
    """x: (B, T, I) float32 (batch_first, like nn.LSTM(batch_first=True)). Returns (B, O)."""
    B, T, I = x.shape
    O = params["b_out"].shape[1]

    # Contiguous (B, T, I) -> (B, T*I): free metadata reshape, no transpose dispatch.
    x2 = x.reshape(B, T * I)

    vmem = pl.BlockSpec(memory_space=pltpu.MemorySpace.VMEM)
    return pl.pallas_call(
        lstm_last_linear_kernel,
        out_shape=jax.ShapeDtypeStruct((B, O), jnp.float32),
        in_specs=[vmem] * 6,
        out_specs=vmem,
    )(x2, params["w_ih"], params["w_hh"], params["b"], params["w_out"], params["b_out"])


def init_params(key, input_size=4, hidden_size=50, output_size=121):
    """Raw parameters in PyTorch layout: W_ih (4H, I), W_hh (4H, H), W_out (O, H)."""
    H, I, O = hidden_size, input_size, output_size
    ks = jax.random.split(key, 6)
    s = 0.1
    return {
        "w_ih": s * jax.random.normal(ks[0], (4 * H, I), jnp.float32),
        "w_hh": s * jax.random.normal(ks[1], (4 * H, H), jnp.float32),
        "b_ih": s * jax.random.normal(ks[2], (4 * H,), jnp.float32),
        "b_hh": s * jax.random.normal(ks[3], (4 * H,), jnp.float32),
        "w_out": s * jax.random.normal(ks[4], (O, H), jnp.float32),
        "b_out": s * jax.random.normal(ks[5], (O,), jnp.float32),
    }


def prepare_params(raw, hidden_pad=HP):
    """Transpose to (in, out) layout, reorder gates [i,f,g,o] -> [i,f,o,g], zero-pad each
    gate's hidden dim to Hp, combine biases, cast weights to bf16.  Zero padding is exact:
    padded hidden units see zero pre-activations (c stays 0, h stays 0 forever) and their
    W_hh / W_out rows are zero, so results are unchanged."""
    fourH = raw["w_ih"].shape[0]
    H = fourH // 4
    Hp = hidden_pad

    def gates_ifog_padded(a):  # (..., 4H) torch order [i,f,g,o] -> (..., 4Hp) order [i,f,o,g]
        i_, f_, g_, o_ = jnp.split(a, 4, axis=-1)
        widths = [(0, 0)] * (a.ndim - 1) + [(0, Hp - H)]
        return jnp.concatenate([jnp.pad(p, widths) for p in (i_, f_, o_, g_)], axis=-1)

    w_ih = gates_ifog_padded(raw["w_ih"].T)                              # (I, 4Hp)
    w_hh = gates_ifog_padded(raw["w_hh"].T)                              # (H, 4Hp)
    w_hh = jnp.pad(w_hh, ((0, Hp - H), (0, 0)))                          # (Hp, 4Hp)
    b = gates_ifog_padded((raw["b_ih"] + raw["b_hh"])[None, :])          # (1, 4Hp)
    w_out = jnp.pad(raw["w_out"].T, ((0, Hp - H), (0, 0)))               # (Hp, O)
    b_out = raw["b_out"][None, :]                                        # (1, O)

    return {
        "w_ih": w_ih.astype(jnp.bfloat16),
        "w_hh": w_hh.astype(jnp.bfloat16),
        "b": b.astype(jnp.float32),
        "w_out": w_out.astype(jnp.bfloat16),
        "b_out": b_out.astype(jnp.float32),
    }


def reference_forward(x, raw):
    """Pure-JAX f32 reference matching the PyTorch module semantics (gate order i,f,g,o)."""
    B, T, _ = x.shape
    H = raw["w_hh"].shape[1]
    w_ih_t, w_hh_t = raw["w_ih"].T, raw["w_hh"].T
    b = raw["b_ih"] + raw["b_hh"]
    h = jnp.zeros((B, H), jnp.float32)
    c = jnp.zeros((B, H), jnp.float32)
    for t in range(T):
        gates = x[:, t, :] @ w_ih_t + h @ w_hh_t + b
        i_g = jax.nn.sigmoid(gates[:, 0 * H:1 * H])
        f_g = jax.nn.sigmoid(gates[:, 1 * H:2 * H])
        g_g = jnp.tanh(gates[:, 2 * H:3 * H])
        o_g = jax.nn.sigmoid(gates[:, 3 * H:4 * H])
        c = f_g * c + i_g * g_g
        h = o_g * jnp.tanh(c)
    return h @ raw["w_out"].T + raw["b_out"]


if __name__ == "__main__":
    B, T, I, H, O = 2, 8, 4, 50, 121

    key = jax.random.PRNGKey(0)
    kx, kp = jax.random.split(key)
    x = jax.random.normal(kx, (B, T, I), jnp.float32)
    raw = init_params(kp, input_size=I, hidden_size=H, output_size=O)
    params = prepare_params(raw)

    fwd = jax.jit(model_forward)
    out = fwd(x, params)
    out = jax.block_until_ready(out)

    assert out.shape == (B, O), out.shape
    ref = reference_forward(x, raw)
    # Tolerance accounts for bf16 MXU operands (f32 accumulation) on all three matmuls.
    err = float(jnp.max(jnp.abs(out - ref)))
    assert jnp.allclose(out, ref, atol=2e-2, rtol=2e-2), f"mismatch vs reference, max abs err={err}"

    print("KERNEL_OK")
</pallas_src>

<mosaic_0001>
module attributes {stable_mosaic.version = 11 : i64} {
  func.func @lstm_last_linear_kernel(%arg0: memref<2x32xf32, #tpu.memory_space<vmem>>, %arg1: memref<4x512xbf16, #tpu.memory_space<vmem>>, %arg2: memref<128x512xbf16, #tpu.memory_space<vmem>>, %arg3: memref<1x512xf32, #tpu.memory_space<vmem>>, %arg4: memref<128x121xbf16, #tpu.memory_space<vmem>>, %arg5: memref<1x121xf32, #tpu.memory_space<vmem>>, %arg6: memref<2x121xf32, #tpu.memory_space<vmem>>) attributes {dimension_semantics = [], scalar_prefetch = 0 : i64, scratch_operands = 0 : i64, tpu.core_type = #tpu.core_type<tc>} {
    %c0 = arith.constant 0 : index
    %c0_0 = arith.constant 0 : index
    %0 = vector.load %arg1[%c0, %c0_0] : memref<4x512xbf16, #tpu.memory_space<vmem>>, vector<4x512xbf16>
    %c0_1 = arith.constant 0 : index
    %c0_2 = arith.constant 0 : index
    %1 = vector.load %arg2[%c0_1, %c0_2] : memref<128x512xbf16, #tpu.memory_space<vmem>>, vector<128x512xbf16>
    %c0_3 = arith.constant 0 : index
    %c0_4 = arith.constant 0 : index
    %2 = vector.load %arg3[%c0_3, %c0_4] : memref<1x512xf32, #tpu.memory_space<vmem>>, vector<1x512xf32>
    %c0_5 = arith.constant 0 : index
    %c0_6 = arith.constant 0 : index
    %3 = vector.load %arg0[%c0_5, %c0_6] : memref<2x32xf32, #tpu.memory_space<vmem>>, vector<2x4xf32>
    %4 = arith.truncf %3 : vector<2x4xf32> to vector<2x4xbf16>
    %cst = arith.constant dense<0.000000e+00> : vector<2x512xf32>
    %5 = tpu.matmul %4, %0, %cst {dimension_numbers = #tpu.dot_dimension_numbers<[1], [0], [0], [1], [0, 0, 1, 1], [], []>} : vector<2x4xbf16>, vector<4x512xbf16>, vector<2x512xf32> -> vector<2x512xf32>
    %6 = vector.broadcast %2 : vector<1x512xf32> to vector<2x512xf32>
    %7 = arith.addf %5, %6 : vector<2x512xf32>
    %c0_7 = arith.constant 0 : index
    %c4 = arith.constant 4 : index
    %8 = vector.load %arg0[%c0_7, %c4] : memref<2x32xf32, #tpu.memory_space<vmem>>, vector<2x4xf32>
    %9 = arith.truncf %8 : vector<2x4xf32> to vector<2x4xbf16>
    %cst_8 = arith.constant dense<0.000000e+00> : vector<2x512xf32>
    %10 = tpu.matmul %9, %0, %cst_8 {dimension_numbers = #tpu.dot_dimension_numbers<[1], [0], [0], [1], [0, 0, 1, 1], [], []>} : vector<2x4xbf16>, vector<4x512xbf16>, vector<2x512xf32> -> vector<2x512xf32>
    %11 = vector.broadcast %2 : vector<1x512xf32> to vector<2x512xf32>
    %12 = arith.addf %10, %11 : vector<2x512xf32>
    %c0_9 = arith.constant 0 : index
    %c8 = arith.constant 8 : index
    %13 = vector.load %arg0[%c0_9, %c8] : memref<2x32xf32, #tpu.memory_space<vmem>>, vector<2x4xf32>
    %14 = arith.truncf %13 : vector<2x4xf32> to vector<2x4xbf16>
    %cst_10 = arith.constant dense<0.000000e+00> : vector<2x512xf32>
    %15 = tpu.matmul %14, %0, %cst_10 {dimension_numbers = #tpu.dot_dimension_numbers<[1], [0], [0], [1], [0, 0, 1, 1], [], []>} : vector<2x4xbf16>, vector<4x512xbf16>, vector<2x512xf32> -> vector<2x512xf32>
    %16 = vector.broadcast %2 : vector<1x512xf32> to vector<2x512xf32>
    %17 = arith.addf %15, %16 : vector<2x512xf32>
    %c0_11 = arith.constant 0 : index
    %c12 = arith.constant 12 : index
    %18 = vector.load %arg0[%c0_11, %c12] : memref<2x32xf32, #tpu.memory_space<vmem>>, vector<2x4xf32>
    %19 = arith.truncf %18 : vector<2x4xf32> to vector<2x4xbf16>
    %cst_12 = arith.constant dense<0.000000e+00> : vector<2x512xf32>
    %20 = tpu.matmul %19, %0, %cst_12 {dimension_numbers = #tpu.dot_dimension_numbers<[1], [0], [0], [1], [0, 0, 1, 1], [], []>} : vector<2x4xbf16>, vector<4x512xbf16>, vector<2x512xf32> -> vector<2x512xf32>
    %21 = vector.broadcast %2 : vector<1x512xf32> to vector<2x512xf32>
    %22 = arith.addf %20, %21 : vector<2x512xf32>
    %c0_13 = arith.constant 0 : index
    %c16 = arith.constant 16 : index
    %23 = vector.load %arg0[%c0_13, %c16] : memref<2x32xf32, #tpu.memory_space<vmem>>, vector<2x4xf32>
    %24 = arith.truncf %23 : vector<2x4xf32> to vector<2x4xbf16>
    %cst_14 = arith.constant dense<0.000000e+00> : vector<2x512xf32>
    %25 = tpu.matmul %24, %0, %cst_14 {dimension_numbers = #tpu.dot_dimension_numbers<[1], [0], [0], [1], [0, 0, 1, 1], [], []>} : vector<2x4xbf16>, vector<4x512xbf16>, vector<2x512xf32> -> vector<2x512xf32>
    %26 = vector.broadcast %2 : vector<1x512xf32> to vector<2x512xf32>
    %27 = arith.addf %25, %26 : vector<2x512xf32>
    %c0_15 = arith.constant 0 : index
    %c20 = arith.constant 20 : index
    %28 = vector.load %arg0[%c0_15, %c20] : memref<2x32xf32, #tpu.memory_space<vmem>>, vector<2x4xf32>
    %29 = arith.truncf %28 : vector<2x4xf32> to vector<2x4xbf16>
    %cst_16 = arith.constant dense<0.000000e+00> : vector<2x512xf32>
    %30 = tpu.matmul %29, %0, %cst_16 {dimension_numbers = #tpu.dot_dimension_numbers<[1], [0], [0], [1], [0, 0, 1, 1], [], []>} : vector<2x4xbf16>, vector<4x512xbf16>, vector<2x512xf32> -> vector<2x512xf32>
    %31 = vector.broadcast %2 : vector<1x512xf32> to vector<2x512xf32>
    %32 = arith.addf %30, %31 : vector<2x512xf32>
    %c0_17 = arith.constant 0 : index
    %c24 = arith.constant 24 : index
    %33 = vector.load %arg0[%c0_17, %c24] : memref<2x32xf32, #tpu.memory_space<vmem>>, vector<2x4xf32>
    %34 = arith.truncf %33 : vector<2x4xf32> to vector<2x4xbf16>
    %cst_18 = arith.constant dense<0.000000e+00> : vector<2x512xf32>
    %35 = tpu.matmul %34, %0, %cst_18 {dimension_numbers = #tpu.dot_dimension_numbers<[1], [0], [0], [1], [0, 0, 1, 1], [], []>} : vector<2x4xbf16>, vector<4x512xbf16>, vector<2x512xf32> -> vector<2x512xf32>
    %36 = vector.broadcast %2 : vector<1x512xf32> to vector<2x512xf32>
    %37 = arith.addf %35, %36 : vector<2x512xf32>
    %c0_19 = arith.constant 0 : index
    %c28 = arith.constant 28 : index
    %38 = vector.load %arg0[%c0_19, %c28] : memref<2x32xf32, #tpu.memory_space<vmem>>, vector<2x4xf32>
    %39 = arith.truncf %38 : vector<2x4xf32> to vector<2x4xbf16>
    %cst_20 = arith.constant dense<0.000000e+00> : vector<2x512xf32>
    %40 = tpu.matmul %39, %0, %cst_20 {dimension_numbers = #tpu.dot_dimension_numbers<[1], [0], [0], [1], [0, 0, 1, 1], [], []>} : vector<2x4xbf16>, vector<4x512xbf16>, vector<2x512xf32> -> vector<2x512xf32>
    %41 = vector.broadcast %2 : vector<1x512xf32> to vector<2x512xf32>
    %42 = arith.addf %40, %41 : vector<2x512xf32>
    %cst_21 = arith.constant 0.000000e+00 : f32
    %43 = vector.broadcast %cst_21 : f32 to vector<2x128xf32>
    %cst_22 = arith.constant 0.000000e+00 : f32
    %44 = vector.broadcast %cst_22 : f32 to vector<2x128xf32>
    %45 = arith.truncf %43 : vector<2x128xf32> to vector<2x128xbf16>
    %cst_23 = arith.constant dense<0.000000e+00> : vector<2x512xf32>
    %46 = tpu.matmul %45, %1, %cst_23 {dimension_numbers = #tpu.dot_dimension_numbers<[1], [0], [0], [1], [0, 0, 1, 1], [], []>} : vector<2x128xbf16>, vector<128x512xbf16>, vector<2x512xf32> -> vector<2x512xf32>
    %47 = arith.addf %7, %46 : vector<2x512xf32>
    %48 = vector.extract_strided_slice %47 {offsets = [0, 0], sizes = [2, 384], strides = [1, 1]} : vector<2x512xf32> to vector<2x384xf32>
    %cst_24 = arith.constant 5.000000e-01 : f32
    %49 = vector.broadcast %cst_24 : f32 to vector<2x384xf32>
    %50 = arith.mulf %49, %48 : vector<2x384xf32>
    %51 = math.tanh %50 : vector<2x384xf32>
    %cst_25 = arith.constant 5.000000e-01 : f32
    %52 = vector.broadcast %cst_25 : f32 to vector<2x384xf32>
    %53 = arith.mulf %52, %51 : vector<2x384xf32>
    %cst_26 = arith.constant 5.000000e-01 : f32
    %54 = vector.broadcast %cst_26 : f32 to vector<2x384xf32>
    %55 = arith.addf %53, %54 : vector<2x384xf32>
    %56 = vector.extract_strided_slice %55 {offsets = [0, 0], sizes = [2, 128], strides = [1, 1]} : vector<2x384xf32> to vector<2x128xf32>
    %57 = vector.extract_strided_slice %55 {offsets = [0, 128], sizes = [2, 128], strides = [1, 1]} : vector<2x384xf32> to vector<2x128xf32>
    %58 = vector.extract_strided_slice %55 {offsets = [0, 256], sizes = [2, 128], strides = [1, 1]} : vector<2x384xf32> to vector<2x128xf32>
    %59 = vector.extract_strided_slice %47 {offsets = [0, 384], sizes = [2, 128], strides = [1, 1]} : vector<2x512xf32> to vector<2x128xf32>
    %60 = math.tanh %59 : vector<2x128xf32>
    %61 = arith.mulf %57, %44 : vector<2x128xf32>
    %62 = arith.mulf %56, %60 : vector<2x128xf32>
    %63 = arith.addf %61, %62 : vector<2x128xf32>
    %64 = math.tanh %63 : vector<2x128xf32>
    %65 = arith.mulf %58, %64 : vector<2x128xf32>
    %66 = arith.truncf %65 : vector<2x128xf32> to vector<2x128xbf16>
    %cst_27 = arith.constant dense<0.000000e+00> : vector<2x512xf32>
    %67 = tpu.matmul %66, %1, %cst_27 {dimension_numbers = #tpu.dot_dimension_numbers<[1], [0], [0], [1], [0, 0, 1, 1], [], []>} : vector<2x128xbf16>, vector<128x512xbf16>, vector<2x512xf32> -> vector<2x512xf32>
    %68 = arith.addf %12, %67 : vector<2x512xf32>
    %69 = vector.extract_strided_slice %68 {offsets = [0, 0], sizes = [2, 384], strides = [1, 1]} : vector<2x512xf32> to vector<2x384xf32>
    %cst_28 = arith.constant 5.000000e-01 : f32
    %70 = vector.broadcast %cst_28 : f32 to vector<2x384xf32>
    %71 = arith.mulf %70, %69 : vector<2x384xf32>
    %72 = math.tanh %71 : vector<2x384xf32>
    %cst_29 = arith.constant 5.000000e-01 : f32
    %73 = vector.broadcast %cst_29 : f32 to vector<2x384xf32>
    %74 = arith.mulf %73, %72 : vector<2x384xf32>
    %cst_30 = arith.constant 5.000000e-01 : f32
    %75 = vector.broadcast %cst_30 : f32 to vector<2x384xf32>
    %76 = arith.addf %74, %75 : vector<2x384xf32>
    %77 = vector.extract_strided_slice %76 {offsets = [0, 0], sizes = [2, 128], strides = [1, 1]} : vector<2x384xf32> to vector<2x128xf32>
    %78 = vector.extract_strided_slice %76 {offsets = [0, 128], sizes = [2, 128], strides = [1, 1]} : vector<2x384xf32> to vector<2x128xf32>
    %79 = vector.extract_strided_slice %76 {offsets = [0, 256], sizes = [2, 128], strides = [1, 1]} : vector<2x384xf32> to vector<2x128xf32>
    %80 = vector.extract_strided_slice %68 {offsets = [0, 384], sizes = [2, 128], strides = [1, 1]} : vector<2x512xf32> to vector<2x128xf32>
    %81 = math.tanh %80 : vector<2x128xf32>
    %82 = arith.mulf %78, %63 : vector<2x128xf32>
    %83 = arith.mulf %77, %81 : vector<2x128xf32>
    %84 = arith.addf %82, %83 : vector<2x128xf32>
    %85 = math.tanh %84 : vector<2x128xf32>
    %86 = arith.mulf %79, %85 : vector<2x128xf32>
    %87 = arith.truncf %86 : vector<2x128xf32> to vector<2x128xbf16>
    %cst_31 = arith.constant dense<0.000000e+00> : vector<2x512xf32>
    %88 = tpu.matmul %87, %1, %cst_31 {dimension_numbers = #tpu.dot_dimension_numbers<[1], [0], [0], [1], [0, 0, 1, 1], [], []>} : vector<2x128xbf16>, vector<128x512xbf16>, vector<2x512xf32> -> vector<2x512xf32>
    %89 = arith.addf %17, %88 : vector<2x512xf32>
    %90 = vector.extract_strided_slice %89 {offsets = [0, 0], sizes = [2, 384], strides = [1, 1]} : vector<2x512xf32> to vector<2x384xf32>
    %cst_32 = arith.constant 5.000000e-01 : f32
    %91 = vector.broadcast %cst_32 : f32 to vector<2x384xf32>
    %92 = arith.mulf %91, %90 : vector<2x384xf32>
    %93 = math.tanh %92 : vector<2x384xf32>
    %cst_33 = arith.constant 5.000000e-01 : f32
    %94 = vector.broadcast %cst_33 : f32 to vector<2x384xf32>
    %95 = arith.mulf %94, %93 : vector<2x384xf32>
    %cst_34 = arith.constant 5.000000e-01 : f32
    %96 = vector.broadcast %cst_34 : f32 to vector<2x384xf32>
    %97 = arith.addf %95, %96 : vector<2x384xf32>
    %98 = vector.extract_strided_slice %97 {offsets = [0, 0], sizes = [2, 128], strides = [1, 1]} : vector<2x384xf32> to vector<2x128xf32>
    %99 = vector.extract_strided_slice %97 {offsets = [0, 128], sizes = [2, 128], strides = [1, 1]} : vector<2x384xf32> to vector<2x128xf32>
    %100 = vector.extract_strided_slice %97 {offsets = [0, 256], sizes = [2, 128], strides = [1, 1]} : vector<2x384xf32> to vector<2x128xf32>
    %101 = vector.extract_strided_slice %89 {offsets = [0, 384], sizes = [2, 128], strides = [1, 1]} : vector<2x512xf32> to vector<2x128xf32>
    %102 = math.tanh %101 : vector<2x128xf32>
    %103 = arith.mulf %99, %84 : vector<2x128xf32>
    %104 = arith.mulf %98, %102 : vector<2x128xf32>
    %105 = arith.addf %103, %104 : vector<2x128xf32>
    %106 = math.tanh %105 : vector<2x128xf32>
    %107 = arith.mulf %100, %106 : vector<2x128xf32>
    %108 = arith.truncf %107 : vector<2x128xf32> to vector<2x128xbf16>
    %cst_35 = arith.constant dense<0.000000e+00> : vector<2x512xf32>
    %109 = tpu.matmul %108, %1, %cst_35 {dimension_numbers = #tpu.dot_dimension_numbers<[1], [0], [0], [1], [0, 0, 1, 1], [], []>} : vector<2x128xbf16>, vector<128x512xbf16>, vector<2x512xf32> -> vector<2x512xf32>
    %110 = arith.addf %22, %109 : vector<2x512xf32>
    %111 = vector.extract_strided_slice %110 {offsets = [0, 0], sizes = [2, 384], strides = [1, 1]} : vector<2x512xf32> to vector<2x384xf32>
    %cst_36 = arith.constant 5.000000e-01 : f32
    %112 = vector.broadcast %cst_36 : f32 to vector<2x384xf32>
    %113 = arith.mulf %112, %111 : vector<2x384xf32>
    %114 = math.tanh %113 : vector<2x384xf32>
    %cst_37 = arith.constant 5.000000e-01 : f32
    %115 = vector.broadcast %cst_37 : f32 to vector<2x384xf32>
    %116 = arith.mulf %115, %114 : vector<2x384xf32>
    %cst_38 = arith.constant 5.000000e-01 : f32
    %117 = vector.broadcast %cst_38 : f32 to vector<2x384xf32>
    %118 = arith.addf %116, %117 : vector<2x384xf32>
    %119 = vector.extract_strided_slice %118 {offsets = [0, 0], sizes = [2, 128], strides = [1, 1]} : vector<2x384xf32> to vector<2x128xf32>
    %120 = vector.extract_strided_slice %118 {offsets = [0, 128], sizes = [2, 128], strides = [1, 1]} : vector<2x384xf32> to vector<2x128xf32>
    %121 = vector.extract_strided_slice %118 {offsets = [0, 256], sizes = [2, 128], strides = [1, 1]} : vector<2x384xf32> to vector<2x128xf32>
    %122 = vector.extract_strided_slice %110 {offsets = [0, 384], sizes = [2, 128], strides = [1, 1]} : vector<2x512xf32> to vector<2x128xf32>
    %123 = math.tanh %122 : vector<2x128xf32>
    %124 = arith.mulf %120, %105 : vector<2x128xf32>
    %125 = arith.mulf %119, %123 : vector<2x128xf32>
    %126 = arith.addf %124, %125 : vector<2x128xf32>
    %127 = math.tanh %126 : vector<2x128xf32>
    %128 = arith.mulf %121, %127 : vector<2x128xf32>
    %129 = arith.truncf %128 : vector<2x128xf32> to vector<2x128xbf16>
    %cst_39 = arith.constant dense<0.000000e+00> : vector<2x512xf32>
    %130 = tpu.matmul %129, %1, %cst_39 {dimension_numbers = #tpu.dot_dimension_numbers<[1], [0], [0], [1], [0, 0, 1, 1], [], []>} : vector<2x128xbf16>, vector<128x512xbf16>, vector<2x512xf32> -> vector<2x512xf32>
    %131 = arith.addf %27, %130 : vector<2x512xf32>
    %132 = vector.extract_strided_slice %131 {offsets = [0, 0], sizes = [2, 384], strides = [1, 1]} : vector<2x512xf32> to vector<2x384xf32>
    %cst_40 = arith.constant 5.000000e-01 : f32
    %133 = vector.broadcast %cst_40 : f32 to vector<2x384xf32>
    %134 = arith.mulf %133, %132 : vector<2x384xf32>
    %135 = math.tanh %134 : vector<2x384xf32>
    %cst_41 = arith.constant 5.000000e-01 : f32
    %136 = vector.broadcast %cst_41 : f32 to vector<2x384xf32>
    %137 = arith.mulf %136, %135 : vector<2x384xf32>
    %cst_42 = arith.constant 5.000000e-01 : f32
    %138 = vector.broadcast %cst_42 : f32 to vector<2x384xf32>
    %139 = arith.addf %137, %138 : vector<2x384xf32>
    %140 = vector.extract_strided_slice %139 {offsets = [0, 0], sizes = [2, 128], strides = [1, 1]} : vector<2x384xf32> to vector<2x128xf32>
    %141 = vector.extract_strided_slice %139 {offsets = [0, 128], sizes = [2, 128], strides = [1, 1]} : vector<2x384xf32> to vector<2x128xf32>
    %142 = vector.extract_strided_slice %139 {offsets = [0, 256], sizes = [2, 128], strides = [1, 1]} : vector<2x384xf32> to vector<2x128xf32>
    %143 = vector.extract_strided_slice %131 {offsets = [0, 384], sizes = [2, 128], strides = [1, 1]} : vector<2x512xf32> to vector<2x128xf32>
    %144 = math.tanh %143 : vector<2x128xf32>
    %145 = arith.mulf %141, %126 : vector<2x128xf32>
    %146 = arith.mulf %140, %144 : vector<2x128xf32>
    %147 = arith.addf %145, %146 : vector<2x128xf32>
    %148 = math.tanh %147 : vector<2x128xf32>
    %149 = arith.mulf %142, %148 : vector<2x128xf32>
    %150 = arith.truncf %149 : vector<2x128xf32> to vector<2x128xbf16>
    %cst_43 = arith.constant dense<0.000000e+00> : vector<2x512xf32>
    %151 = tpu.matmul %150, %1, %cst_43 {dimension_numbers = #tpu.dot_dimension_numbers<[1], [0], [0], [1], [0, 0, 1, 1], [], []>} : vector<2x128xbf16>, vector<128x512xbf16>, vector<2x512xf32> -> vector<2x512xf32>
    %152 = arith.addf %32, %151 : vector<2x512xf32>
    %153 = vector.extract_strided_slice %152 {offsets = [0, 0], sizes = [2, 384], strides = [1, 1]} : vector<2x512xf32> to vector<2x384xf32>
    %cst_44 = arith.constant 5.000000e-01 : f32
    %154 = vector.broadcast %cst_44 : f32 to vector<2x384xf32>
    %155 = arith.mulf %154, %153 : vector<2x384xf32>
    %156 = math.tanh %155 : vector<2x384xf32>
    %cst_45 = arith.constant 5.000000e-01 : f32
    %157 = vector.broadcast %cst_45 : f32 to vector<2x384xf32>
    %158 = arith.mulf %157, %156 : vector<2x384xf32>
    %cst_46 = arith.constant 5.000000e-01 : f32
    %159 = vector.broadcast %cst_46 : f32 to vector<2x384xf32>
    %160 = arith.addf %158, %159 : vector<2x384xf32>
    %161 = vector.extract_strided_slice %160 {offsets = [0, 0], sizes = [2, 128], strides = [1, 1]} : vector<2x384xf32> to vector<2x128xf32>
    %162 = vector.extract_strided_slice %160 {offsets = [0, 128], sizes = [2, 128], strides = [1, 1]} : vector<2x384xf32> to vector<2x128xf32>
    %163 = vector.extract_strided_slice %160 {offsets = [0, 256], sizes = [2, 128], strides = [1, 1]} : vector<2x384xf32> to vector<2x128xf32>
    %164 = vector.extract_strided_slice %152 {offsets = [0, 384], sizes = [2, 128], strides = [1, 1]} : vector<2x512xf32> to vector<2x128xf32>
    %165 = math.tanh %164 : vector<2x128xf32>
    %166 = arith.mulf %162, %147 : vector<2x128xf32>
    %167 = arith.mulf %161, %165 : vector<2x128xf32>
    %168 = arith.addf %166, %167 : vector<2x128xf32>
    %169 = math.tanh %168 : vector<2x128xf32>
    %170 = arith.mulf %163, %169 : vector<2x128xf32>
    %171 = arith.truncf %170 : vector<2x128xf32> to vector<2x128xbf16>
    %cst_47 = arith.constant dense<0.000000e+00> : vector<2x512xf32>
    %172 = tpu.matmul %171, %1, %cst_47 {dimension_numbers = #tpu.dot_dimension_numbers<[1], [0], [0], [1], [0, 0, 1, 1], [], []>} : vector<2x128xbf16>, vector<128x512xbf16>, vector<2x512xf32> -> vector<2x512xf32>
    %173 = arith.addf %37, %172 : vector<2x512xf32>
    %174 = vector.extract_strided_slice %173 {offsets = [0, 0], sizes = [2, 384], strides = [1, 1]} : vector<2x512xf32> to vector<2x384xf32>
    %cst_48 = arith.constant 5.000000e-01 : f32
    %175 = vector.broadcast %cst_48 : f32 to vector<2x384xf32>
    %176 = arith.mulf %175, %174 : vector<2x384xf32>
    %177 = math.tanh %176 : vector<2x384xf32>
    %cst_49 = arith.constant 5.000000e-01 : f32
    %178 = vector.broadcast %cst_49 : f32 to vector<2x384xf32>
    %179 = arith.mulf %178, %177 : vector<2x384xf32>
    %cst_50 = arith.constant 5.000000e-01 : f32
    %180 = vector.broadcast %cst_50 : f32 to vector<2x384xf32>
    %181 = arith.addf %179, %180 : vector<2x384xf32>
    %182 = vector.extract_strided_slice %181 {offsets = [0, 0], sizes = [2, 128], strides = [1, 1]} : vector<2x384xf32> to vector<2x128xf32>
    %183 = vector.extract_strided_slice %181 {offsets = [0, 128], sizes = [2, 128], strides = [1, 1]} : vector<2x384xf32> to vector<2x128xf32>
    %184 = vector.extract_strided_slice %181 {offsets = [0, 256], sizes = [2, 128], strides = [1, 1]} : vector<2x384xf32> to vector<2x128xf32>
    %185 = vector.extract_strided_slice %173 {offsets = [0, 384], sizes = [2, 128], strides = [1, 1]} : vector<2x512xf32> to vector<2x128xf32>
    %186 = math.tanh %185 : vector<2x128xf32>
    %187 = arith.mulf %183, %168 : vector<2x128xf32>
    %188 = arith.mulf %182, %186 : vector<2x128xf32>
    %189 = arith.addf %187, %188 : vector<2x128xf32>
    %190 = math.tanh %189 : vector<2x128xf32>
    %191 = arith.mulf %184, %190 : vector<2x128xf32>
    %192 = arith.truncf %191 : vector<2x128xf32> to vector<2x128xbf16>
    %cst_51 = arith.constant dense<0.000000e+00> : vector<2x512xf32>
    %193 = tpu.matmul %192, %1, %cst_51 {dimension_numbers = #tpu.dot_dimension_numbers<[1], [0], [0], [1], [0, 0, 1, 1], [], []>} : vector<2x128xbf16>, vector<128x512xbf16>, vector<2x512xf32> -> vector<2x512xf32>
    %194 = arith.addf %42, %193 : vector<2x512xf32>
    %195 = vector.extract_strided_slice %194 {offsets = [0, 0], sizes = [2, 384], strides = [1, 1]} : vector<2x512xf32> to vector<2x384xf32>
    %cst_52 = arith.constant 5.000000e-01 : f32
    %196 = vector.broadcast %cst_52 : f32 to vector<2x384xf32>
    %197 = arith.mulf %196, %195 : vector<2x384xf32>
    %198 = math.tanh %197 : vector<2x384xf32>
    %cst_53 = arith.constant 5.000000e-01 : f32
    %199 = vector.broadcast %cst_53 : f32 to vector<2x384xf32>
    %200 = arith.mulf %199, %198 : vector<2x384xf32>
    %cst_54 = arith.constant 5.000000e-01 : f32
    %201 = vector.broadcast %cst_54 : f32 to vector<2x384xf32>
    %202 = arith.addf %200, %201 : vector<2x384xf32>
    %203 = vector.extract_strided_slice %202 {offsets = [0, 0], sizes = [2, 128], strides = [1, 1]} : vector<2x384xf32> to vector<2x128xf32>
    %204 = vector.extract_strided_slice %202 {offsets = [0, 128], sizes = [2, 128], strides = [1, 1]} : vector<2x384xf32> to vector<2x128xf32>
    %205 = vector.extract_strided_slice %202 {offsets = [0, 256], sizes = [2, 128], strides = [1, 1]} : vector<2x384xf32> to vector<2x128xf32>
    %206 = vector.extract_strided_slice %194 {offsets = [0, 384], sizes = [2, 128], strides = [1, 1]} : vector<2x512xf32> to vector<2x128xf32>
    %207 = math.tanh %206 : vector<2x128xf32>
    %208 = arith.mulf %204, %189 : vector<2x128xf32>
    %209 = arith.mulf %203, %207 : vector<2x128xf32>
    %210 = arith.addf %208, %209 : vector<2x128xf32>
    %211 = math.tanh %210 : vector<2x128xf32>
    %212 = arith.mulf %205, %211 : vector<2x128xf32>
    %213 = arith.truncf %212 : vector<2x128xf32> to vector<2x128xbf16>
    %c0_55 = arith.constant 0 : index
    %c0_56 = arith.constant 0 : index
    %214 = vector.load %arg4[%c0_55, %c0_56] : memref<128x121xbf16, #tpu.memory_space<vmem>>, vector<128x121xbf16>
    %cst_57 = arith.constant dense<0.000000e+00> : vector<2x121xf32>
    %215 = tpu.matmul %213, %214, %cst_57 {dimension_numbers = #tpu.dot_dimension_numbers<[1], [0], [0], [1], [0, 0, 1, 1], [], []>} : vector<2x128xbf16>, vector<128x121xbf16>, vector<2x121xf32> -> vector<2x121xf32>
    %c0_58 = arith.constant 0 : index
    %c0_59 = arith.constant 0 : index
    %216 = vector.load %arg5[%c0_58, %c0_59] : memref<1x121xf32, #tpu.memory_space<vmem>>, vector<1x121xf32>
    %217 = vector.broadcast %216 : vector<1x121xf32> to vector<2x121xf32>
    %218 = arith.addf %215, %217 : vector<2x121xf32>
    %c0_60 = arith.constant 0 : index
    %c0_61 = arith.constant 0 : index
    %219 = vector.load %arg6[%c0_60, %c0_61] : memref<2x121xf32, #tpu.memory_space<vmem>>, vector<2x121xf32>
    tpu.vector_store %arg6[%c0_60, %c0_61], %218 {strides = array<i32>} : memref<2x121xf32, #tpu.memory_space<vmem>>, vector<2x121xf32>,
    return
  }
}

</mosaic_0001>

<llo_original>
// kernel: model_forward.1
$region0: #{model_forward.1}
  #allocation0 [shape = 'u32[]', space=smem, size = 0x4, offset = 0x4, fixed_abs, tag = 'smem constant byte address 0x4 - core index']
  #allocation1 [shape = 'u32[144,128]{1,0:T(1,128)}', space=vmem, size = 0x12000, scoped, tag = 'internal scratch']
  %s0 = inlined_call_operand.vmem [shape: f32[2,32], index: 0, kind: input, shape index: {}]
  %s1 = inlined_call_operand.vmem [shape: bf16[4,512], index: 1, kind: input, shape index: {}]
  %s2 = inlined_call_operand.hbm [shape: bf16[128,512], index: 2, kind: input, shape index: {}]
  %s3 = inlined_call_operand.vmem [shape: f32[1,512], index: 3, kind: input, shape index: {}]
  %s4 = inlined_call_operand.hbm [shape: bf16[128,121], index: 4, kind: input, shape index: {}]
  %s5 = inlined_call_operand.vmem [shape: f32[1,121], index: 5, kind: input, shape index: {}]
  %s6 = inlined_call_operand.hbm [shape: f32[2,121], index: 6, kind: output, shape index: {}]
  %s7 = sld [smem:[#allocation0]]
  $region42: #{model_forward.1} parent=0
    _
  %s9 = ssub.s32 1, %s7
  %s10 = scalar_select 0, %s9, %s7
  $region1: #{model_forward.1} parent=0
    #allocation2 [shape = 'u8[131072]{0}', space=vmem, size = 0x20000, scoped, tag = 'input window, operand 2, single buffered']
    #allocation3 [shape = 's32[1]{0}', space=sflag, size = 0x4, scoped, tag = 'scoped memory for model_forward.1']
    #allocation4 [shape = 's32[1]{0}', space=sflag, size = 0x4, scoped, tag = 'scoped memory for model_forward.1']
    #allocation5 [shape = 'u8[32768]{0}', space=vmem, size = 0x8000, scoped, tag = 'input window, operand 4, single buffered']
    #allocation6 [shape = 's32[1]{0}', space=sflag, size = 0x4, scoped, tag = 'scoped memory for model_forward.1']
    #allocation7 [shape = 'u8[1024]{0}', space=vmem, size = 0x400, scoped, tag = 'output window, operand 0, single buffered']
    %11 = vsyncpa [#allocation3], 0
    %12 = vsyncpa [#allocation6], 0
    %13 = vsyncpa [#allocation4], 0
    // Predicated region
    $region2: #{model_forward.1} parent=1 // pred_check
      _
    $region3: #{model_forward.1} parent=1 // pred_check_branch
      %15 = sbr.rel (0) target = $region5
    $region4: #{model_forward.1} parent=1 // pred_region
      _
    $region5: #{model_forward.1} parent=1 // pred_fallthru
      _
    // Predicated region
    $region6: #{model_forward.1} parent=1 // pred_check
      _
    $region7: #{model_forward.1} parent=1 // pred_check_branch
      %17 = sbr.rel (0) target = $region9
    $region8: #{model_forward.1} parent=1 // pred_region
      _
    $region9: #{model_forward.1} parent=1 // pred_fallthru
      _
    // Predicated region
    $region10: #{model_forward.1} parent=1 // pred_check
      _
    $region11: #{model_forward.1} parent=1 // pred_check_branch
      %19 = sbr.rel (0) target = $region13
    $region12: #{model_forward.1} parent=1 // pred_region
      %s21 = ssub.s32 4096, 4096
      %22 = vsyncadd [#allocation3], %s21
      %s23 = sshll.u32 [#allocation2], 4
      %s24 = int_to_ptr.vmem [resolvable:$true] %s23
      %29 = dma.hbm_to_vmem [thread:$0]  %s2, 4096, %s24, [#allocation3], 256, 256, 16
    $region13: #{model_forward.1} parent=1 // pred_fallthru
      _
    // Predicated region
    $region14: #{model_forward.1} parent=1 // pred_check
      _
    $region15: #{model_forward.1} parent=1 // pred_check_branch
      %31 = sbr.rel (0) target = $region17
    $region16: #{model_forward.1} parent=1 // pred_region
      _
    $region17: #{model_forward.1} parent=1 // pred_fallthru
      _
    // Predicated region
    $region18: #{model_forward.1} parent=1 // pred_check
      _
    $region19: #{model_forward.1} parent=1 // pred_check_branch
      %33 = sbr.rel (0) target = $region21
    $region20: #{model_forward.1} parent=1 // pred_region
      %s35 = ssub.s32 1024, 1024
      %36 = vsyncadd [#allocation6], %s35
      %s37 = sshll.u32 [#allocation5], 4
      %s38 = int_to_ptr.vmem [resolvable:$true] %s37
      %43 = dma.hbm_to_vmem [thread:$0]  %s4, 1024, %s38, [#allocation6], 64, 64, 4
    $region21: #{model_forward.1} parent=1 // pred_fallthru
      _
    // Predicated region
    $region22: #{model_forward.1} parent=1 // pred_check
      _
    $region23: #{model_forward.1} parent=1 // pred_check_branch
      %45 = sbr.rel (0) target = $region25
    $region24: #{model_forward.1} parent=1 // pred_region
      _
    $region25: #{model_forward.1} parent=1 // pred_fallthru
      _
    // Predicated region
    $region26: #{model_forward.1} parent=1 // pred_check
      _
    $region27: #{model_forward.1} parent=1 // pred_check_branch
      %47 = sbr.rel (0) target = $region29
    $region28: #{model_forward.1} parent=1 // pred_region
      %48 = dma.done [#allocation3], 4096
    $region29: #{model_forward.1} parent=1 // pred_fallthru
      _
    // Predicated region
    $region30: #{model_forward.1} parent=1 // pred_check
      _
    $region31: #{model_forward.1} parent=1 // pred_check_branch
      %50 = sbr.rel (0) target = $region33
    $region32: #{model_forward.1} parent=1 // pred_region
      %51 = dma.done [#allocation6], 1024
    $region33: #{model_forward.1} parent=1 // pred_fallthru
      _
    %v53 = vld [vmem:[%s1] sm:$0xff]
    %v54 = vld [vmem:[#allocation2] sm:$0xff]
    %v55 = vld [vmem:[#allocation2 + $0x8] sm:$0xff]
    %v56 = vld [vmem:[#allocation2 + $0x10] sm:$0xff]
    %v57 = vld [vmem:[#allocation2 + $0x18] sm:$0xff]
    %v58 = vld [vmem:[#allocation2 + $0x20] sm:$0xff]
    %v59 = vld [vmem:[#allocation2 + $0x28] sm:$0xff]
    %v60 = vld [vmem:[#allocation2 + $0x30] sm:$0xff]
    %v61 = vld [vmem:[#allocation2 + $0x38] sm:$0xff]
    %v62 = vld [vmem:[#allocation2 + $0x40] sm:$0xff]
    %v63 = vld [vmem:[#allocation2 + $0x48] sm:$0xff]
    %v64 = vld [vmem:[#allocation2 + $0x50] sm:$0xff]
    %v65 = vld [vmem:[#allocation2 + $0x58] sm:$0xff]
    %v66 = vld [vmem:[#allocation2 + $0x60] sm:$0xff]
    %v67 = vld [vmem:[#allocation2 + $0x68] sm:$0xff]
    %v68 = vld [vmem:[#allocation2 + $0x70] sm:$0xff]
    %v69 = vld [vmem:[#allocation2 + $0x78] sm:$0xff]
    %v70 = vld [vmem:[#allocation2 + $0x80] sm:$0xff]
    %v71 = vld [vmem:[#allocation2 + $0x88] sm:$0xff]
    %v72 = vld [vmem:[#allocation2 + $0x90] sm:$0xff]
    %v73 = vld [vmem:[#allocation2 + $0x98] sm:$0xff]
    %v74 = vld [vmem:[#allocation2 + $0xa0] sm:$0xff]
    %v75 = vld [vmem:[#allocation2 + $0xa8] sm:$0xff]
    %v76 = vld [vmem:[#allocation2 + $0xb0] sm:$0xff]
    %v77 = vld [vmem:[#allocation2 + $0xb8] sm:$0xff]
    %v78 = vld [vmem:[#allocation2 + $0xc0] sm:$0xff]
    %v79 = vld [vmem:[#allocation2 + $0xc8] sm:$0xff]
    %v80 = vld [vmem:[#allocation2 + $0xd0] sm:$0xff]
    %v81 = vld [vmem:[#allocation2 + $0xd8] sm:$0xff]
    %v82 = vld [vmem:[#allocation2 + $0xe0] sm:$0xff]
    %v83 = vld [vmem:[#allocation2 + $0xe8] sm:$0xff]
    %v84 = vld [vmem:[#allocation2 + $0xf0] sm:$0xff]
    %v85 = vld [vmem:[#allocation2 + $0xf8] sm:$0xff]
    %v86 = vld [vmem:[%s3] sm:$0xf]
    %v87 = vld [vmem:[%s0] sm:$0x3]
    %v88 = vpack.c.bf16 %v87, %v87
    %v90 = vlaneseq
    %v91 = vshrl.u32 %v90, 7
    %v92 = vsub.s32 0, %v91
    %v93 = vrot.slane %v86, %v92
    %v94 = vlaneseq
    %v95 = vshrl.u32 %v94, 7
    %v96 = vsub.s32 1, %v95
    %v97 = vrot.slane %v86, %v96
    %v98 = vlaneseq
    %v99 = vshrl.u32 %v98, 7
    %v100 = vsub.s32 2, %v99
    %v101 = vrot.slane %v86, %v100
    %v102 = vlaneseq
    %v103 = vshrl.u32 %v102, 7
    %v104 = vsub.s32 3, %v103
    %v105 = vrot.slane %v86, %v104
    %v111 = vcombine.high %v53, %v53
    %v113 = vunpack.c.l.s4 1983009808
    %v114 = vunpack.c.0.s8 %v113
    %v115 = vlaneseq
    %v116 = vshrl.u32 %v115, 7
    %v117 = vsub.s32 %v114, %v116
    %v118 = vrot.slane %v53, %v117
    %v120 = vunpack.c.l.s4 1983009808
    %v121 = vunpack.c.0.s8 %v120
    %v122 = vlaneseq
    %v123 = vshrl.u32 %v122, 7
    %v124 = vsub.s32 %v121, %v123
    %v125 = vrot.slane %v111, %v124
    %v126 = vcombine.high %v118, %v118
    %v127 = vcombine.high %v125, %v125
    %vm128 = vcmask 31744
    %v130 = vsel %vm128, %v88, 0
    %vm132 = vcmask 1041408
    %v134 = vsel %vm132, %v118, 0
    %v137 = vsel %vm132, %v126, 0
    %v140 = vsel %vm132, %v125, 0
    %v143 = vsel %vm132, %v127, 0
    %145 = vmatprep.subr.bf16.mxu0 %v137
    %146 = vmatpush1.bf16.msra.mxu0 %v134
    %147 = vmatprep.subr.bf16.mxu0 0
    %148 = vmatpush1.bf16.msra.mxu0 0
    %149 = vmatprep.subr.bf16.mxu0 0
    %150 = vmatpush1.bf16.msra.mxu0 0
    %151 = vmatprep.subr.bf16.mxu0 0
    %152 = vmatpush1.bf16.msra.mxu0 0
    %153 = vmatprep.subr.bf16.mxu0 0
    %154 = vmatpush1.bf16.msra.mxu0 0
    %155 = vmatprep.subr.bf16.mxu0 0
    %156 = vmatpush1.bf16.msra.mxu0 0
    %157 = vmatprep.subr.bf16.mxu0 0
    %158 = vmatpush1.bf16.msra.mxu0 0
    %159 = vmatprep.subr.bf16.mxu0 0
    %160 = vmatpush1.bf16.msra.mxu0 0
    %161 = vmatprep.subr.bf16.mxu0 0
    %162 = vmatpush1.bf16.msra.mxu0 0
    %163 = vmatprep.subr.bf16.mxu0 0
    %164 = vmatpush1.bf16.msra.mxu0 0
    %165 = vmatprep.subr.bf16.mxu0 0
    %166 = vmatpush1.bf16.msra.mxu0 0
    %167 = vmatprep.subr.bf16.mxu0 0
    %168 = vmatpush1.bf16.msra.mxu0 0
    %169 = vmatprep.subr.bf16.mxu0 0
    %170 = vmatpush1.bf16.msra.mxu0 0
    %171 = vmatprep.subr.bf16.mxu0 0
    %172 = vmatpush1.bf16.msra.mxu0 0
    %173 = vmatprep.subr.bf16.mxu0 0
    %174 = vmatpush1.bf16.msra.mxu0 0
    %175 = vmatprep.subr.bf16.mxu0 0
    %176 = vmatpush1.bf16.msra.mxu0 0
    %177 = vmatprep.mubr.bf16.mxu0 0
    %178 = vmatmul.mubr.bf16.gmra.mrb[0].mxu0 %v130
    %v179 = vpop.f32.mrb[0].mxu0
    %v180 = vadd.f32 %v93, %v179
    %v181 = vpop.f32.mrb[0].mxu0
    %v182 = vadd.f32 %v97, %v181
    %v183 = vpop.f32.mrb[0].mxu0
    %v184 = vpop.f32.mrb[0].mxu0
    %185 = vdwg.mxu0
    %186 = vmatprep.subr.bf16.mxu0 %v143
    %187 = vmatpush1.bf16.msra.mxu0 %v140
    %188 = vmatprep.subr.bf16.mxu0 0
    %189 = vmatpush1.bf16.msra.mxu0 0
    %190 = vmatprep.subr.bf16.mxu0 0
    %191 = vmatpush1.bf16.msra.mxu0 0
    %192 = vmatprep.subr.bf16.mxu0 0
    %193 = vmatpush1.bf16.msra.mxu0 0
    %194 = vmatprep.subr.bf16.mxu0 0
    %195 = vmatpush1.bf16.msra.mxu0 0
    %196 = vmatprep.subr.bf16.mxu0 0
    %197 = vmatpush1.bf16.msra.mxu0 0
    %198 = vmatprep.subr.bf16.mxu0 0
    %199 = vmatpush1.bf16.msra.mxu0 0
    %200 = vmatprep.subr.bf16.mxu0 0
    %201 = vmatpush1.bf16.msra.mxu0 0
    %202 = vmatprep.subr.bf16.mxu0 0
    %203 = vmatpush1.bf16.msra.mxu0 0
    %204 = vmatprep.subr.bf16.mxu0 0
    %205 = vmatpush1.bf16.msra.mxu0 0
    %206 = vmatprep.subr.bf16.mxu0 0
    %207 = vmatpush1.bf16.msra.mxu0 0
    %208 = vmatprep.subr.bf16.mxu0 0
    %209 = vmatpush1.bf16.msra.mxu0 0
    %210 = vmatprep.subr.bf16.mxu0 0
    %211 = vmatpush1.bf16.msra.mxu0 0
    %212 = vmatprep.subr.bf16.mxu0 0
    %213 = vmatpush1.bf16.msra.mxu0 0
    %214 = vmatprep.subr.bf16.mxu0 0
    %215 = vmatpush1.bf16.msra.mxu0 0
    %216 = vmatprep.subr.bf16.mxu0 0
    %217 = vmatpush1.bf16.msra.mxu0 0
    %218 = vmatprep.mubr.bf16.mxu0 0
    %219 = vmatmul.mubr.bf16.gmra.mrb[0].mxu0 %v130
    %v220 = vpop.f32.mrb[0].mxu0
    %v221 = vadd.f32 %v101, %v220
    %v222 = vpop.f32.mrb[0].mxu0
    %v223 = vadd.f32 %v105, %v222
    %v224 = vpop.f32.mrb[0].mxu0
    %v225 = vpop.f32.mrb[0].mxu0
    %226 = vdwg.mxu0
    %v227 = vld [vmem:[%s0] sm:$0x3]
    %v228 = vpack.c.bf16 %v227, %v227
    %230 = vrot.lane.b32.xlu0 %v228, 124
    %v231 = vpop.permute.xlu0 %230
    %v233 = vsel %vm128, %v231, 0
    %235 = vmatprep.subr.bf16.mxu0 %v137
    %236 = vmatpush1.bf16.msra.mxu0 %v134
    %237 = vmatprep.subr.bf16.mxu0 0
    %238 = vmatpush1.bf16.msra.mxu0 0
    %239 = vmatprep.subr.bf16.mxu0 0
    %240 = vmatpush1.bf16.msra.mxu0 0
    %241 = vmatprep.subr.bf16.mxu0 0
    %242 = vmatpush1.bf16.msra.mxu0 0
    %243 = vmatprep.subr.bf16.mxu0 0
    %244 = vmatpush1.bf16.msra.mxu0 0
    %245 = vmatprep.subr.bf16.mxu0 0
    %246 = vmatpush1.bf16.msra.mxu0 0
    %247 = vmatprep.subr.bf16.mxu0 0
    %248 = vmatpush1.bf16.msra.mxu0 0
    %249 = vmatprep.subr.bf16.mxu0 0
    %250 = vmatpush1.bf16.msra.mxu0 0
    %251 = vmatprep.subr.bf16.mxu0 0
    %252 = vmatpush1.bf16.msra.mxu0 0
    %253 = vmatprep.subr.bf16.mxu0 0
    %254 = vmatpush1.bf16.msra.mxu0 0
    %255 = vmatprep.subr.bf16.mxu0 0
    %256 = vmatpush1.bf16.msra.mxu0 0
    %257 = vmatprep.subr.bf16.mxu0 0
    %258 = vmatpush1.bf16.msra.mxu0 0
    %259 = vmatprep.subr.bf16.mxu0 0
    %260 = vmatpush1.bf16.msra.mxu0 0
    %261 = vmatprep.subr.bf16.mxu0 0
    %262 = vmatpush1.bf16.msra.mxu0 0
    %263 = vmatprep.subr.bf16.mxu0 0
    %264 = vmatpush1.bf16.msra.mxu0 0
    %265 = vmatprep.subr.bf16.mxu0 0
    %266 = vmatpush1.bf16.msra.mxu0 0
    %267 = vmatprep.mubr.bf16.mxu0 0
    %268 = vmatmul.mubr.bf16.gmra.mrb[0].mxu0 %v233
    %v269 = vpop.f32.mrb[0].mxu0
    %v270 = vadd.f32 %v93, %v269
    %v271 = vpop.f32.mrb[0].mxu0
    %v272 = vadd.f32 %v97, %v271
    %v273 = vpop.f32.mrb[0].mxu0
    %v274 = vpop.f32.mrb[0].mxu0
    %275 = vdwg.mxu0
    %276 = vmatprep.subr.bf16.mxu0 %v143
    %277 = vmatpush1.bf16.msra.mxu0 %v140
    %278 = vmatprep.subr.bf16.mxu0 0
    %279 = vmatpush1.bf16.msra.mxu0 0
    %280 = vmatprep.subr.bf16.mxu0 0
    %281 = vmatpush1.bf16.msra.mxu0 0
    %282 = vmatprep.subr.bf16.mxu0 0
    %283 = vmatpush1.bf16.msra.mxu0 0
    %284 = vmatprep.subr.bf16.mxu0 0
    %285 = vmatpush1.bf16.msra.mxu0 0
    %286 = vmatprep.subr.bf16.mxu0 0
    %287 = vmatpush1.bf16.msra.mxu0 0
    %288 = vmatprep.subr.bf16.mxu0 0
    %289 = vmatpush1.bf16.msra.mxu0 0
    %290 = vmatprep.subr.bf16.mxu0 0
    %291 = vmatpush1.bf16.msra.mxu0 0
    %292 = vmatprep.subr.bf16.mxu0 0
    %293 = vmatpush1.bf16.msra.mxu0 0
    %294 = vmatprep.subr.bf16.mxu0 0
    %295 = vmatpush1.bf16.msra.mxu0 0
    %296 = vmatprep.subr.bf16.mxu0 0
    %297 = vmatpush1.bf16.msra.mxu0 0
    %298 = vmatprep.subr.bf16.mxu0 0
    %299 = vmatpush1.bf16.msra.mxu0 0
    %300 = vmatprep.subr.bf16.mxu0 0
    %301 = vmatpush1.bf16.msra.mxu0 0
    %302 = vmatprep.subr.bf16.mxu0 0
    %303 = vmatpush1.bf16.msra.mxu0 0
    %304 = vmatprep.subr.bf16.mxu0 0
    %305 = vmatpush1.bf16.msra.mxu0 0
    %306 = vmatprep.subr.bf16.mxu0 0
    %307 = vmatpush1.bf16.msra.mxu0 0
    %308 = vmatprep.mubr.bf16.mxu0 0
    %309 = vmatmul.mubr.bf16.gmra.mrb[0].mxu0 %v233
    %v310 = vpop.f32.mrb[0].mxu0
    %v311 = vadd.f32 %v101, %v310
    %v312 = vpop.f32.mrb[0].mxu0
    %v313 = vadd.f32 %v105, %v312
    %v314 = vpop.f32.mrb[0].mxu0
    %v315 = vpop.f32.mrb[0].mxu0
    %316 = vdwg.mxu0
    %v317 = vld [vmem:[%s0] sm:$0x3]
    %v318 = vpack.c.bf16 %v317, %v317
    %320 = vrot.lane.b32.xlu0 %v318, 120
    %v321 = vpop.permute.xlu0 %320
    %v323 = vsel %vm128, %v321, 0
    %325 = vmatprep.subr.bf16.mxu0 %v137
    %326 = vmatpush1.bf16.msra.mxu0 %v134
    %327 = vmatprep.subr.bf16.mxu0 0
    %328 = vmatpush1.bf16.msra.mxu0 0
    %329 = vmatprep.subr.bf16.mxu0 0
    %330 = vmatpush1.bf16.msra.mxu0 0
    %331 = vmatprep.subr.bf16.mxu0 0
    %332 = vmatpush1.bf16.msra.mxu0 0
    %333 = vmatprep.subr.bf16.mxu0 0
    %334 = vmatpush1.bf16.msra.mxu0 0
    %335 = vmatprep.subr.bf16.mxu0 0
    %336 = vmatpush1.bf16.msra.mxu0 0
    %337 = vmatprep.subr.bf16.mxu0 0
    %338 = vmatpush1.bf16.msra.mxu0 0
    %339 = vmatprep.subr.bf16.mxu0 0
    %340 = vmatpush1.bf16.msra.mxu0 0
    %341 = vmatprep.subr.bf16.mxu0 0
    %342 = vmatpush1.bf16.msra.mxu0 0
    %343 = vmatprep.subr.bf16.mxu0 0
    %344 = vmatpush1.bf16.msra.mxu0 0
    %345 = vmatprep.subr.bf16.mxu0 0
    %346 = vmatpush1.bf16.msra.mxu0 0
    %347 = vmatprep.subr.bf16.mxu0 0
    %348 = vmatpush1.bf16.msra.mxu0 0
    %349 = vmatprep.subr.bf16.mxu0 0
    %350 = vmatpush1.bf16.msra.mxu0 0
    %351 = vmatprep.subr.bf16.mxu0 0
    %352 = vmatpush1.bf16.msra.mxu0 0
    %353 = vmatprep.subr.bf16.mxu0 0
    %354 = vmatpush1.bf16.msra.mxu0 0
    %355 = vmatprep.subr.bf16.mxu0 0
    %356 = vmatpush1.bf16.msra.mxu0 0
    %357 = vmatprep.mubr.bf16.mxu0 0
    %358 = vmatmul.mubr.bf16.gmra.mrb[0].mxu0 %v323
    %v359 = vpop.f32.mrb[0].mxu0
    %v360 = vadd.f32 %v93, %v359
    %v361 = vpop.f32.mrb[0].mxu0
    %v362 = vadd.f32 %v97, %v361
    %v363 = vpop.f32.mrb[0].mxu0
    %v364 = vpop.f32.mrb[0].mxu0
    %365 = vdwg.mxu0
    %366 = vmatprep.subr.bf16.mxu0 %v143
    %367 = vmatpush1.bf16.msra.mxu0 %v140
    %368 = vmatprep.subr.bf16.mxu0 0
    %369 = vmatpush1.bf16.msra.mxu0 0
    %370 = vmatprep.subr.bf16.mxu0 0
    %371 = vmatpush1.bf16.msra.mxu0 0
    %372 = vmatprep.subr.bf16.mxu0 0
    %373 = vmatpush1.bf16.msra.mxu0 0
    %374 = vmatprep.subr.bf16.mxu0 0
    %375 = vmatpush1.bf16.msra.mxu0 0
    %376 = vmatprep.subr.bf16.mxu0 0
    %377 = vmatpush1.bf16.msra.mxu0 0
    %378 = vmatprep.subr.bf16.mxu0 0
    %379 = vmatpush1.bf16.msra.mxu0 0
    %380 = vmatprep.subr.bf16.mxu0 0
    %381 = vmatpush1.bf16.msra.mxu0 0
    %382 = vmatprep.subr.bf16.mxu0 0
    %383 = vmatpush1.bf16.msra.mxu0 0
    %384 = vmatprep.subr.bf16.mxu0 0
    %385 = vmatpush1.bf16.msra.mxu0 0
    %386 = vmatprep.subr.bf16.mxu0 0
    %387 = vmatpush1.bf16.msra.mxu0 0
    %388 = vmatprep.subr.bf16.mxu0 0
    %389 = vmatpush1.bf16.msra.mxu0 0
    %390 = vmatprep.subr.bf16.mxu0 0
    %391 = vmatpush1.bf16.msra.mxu0 0
    %392 = vmatprep.subr.bf16.mxu0 0
    %393 = vmatpush1.bf16.msra.mxu0 0
    %394 = vmatprep.subr.bf16.mxu0 0
    %395 = vmatpush1.bf16.msra.mxu0 0
    %396 = vmatprep.subr.bf16.mxu0 0
    %397 = vmatpush1.bf16.msra.mxu0 0
    %398 = vmatprep.mubr.bf16.mxu0 0
    %399 = vmatmul.mubr.bf16.gmra.mrb[0].mxu0 %v323
    %v400 = vpop.f32.mrb[0].mxu0
    %v401 = vadd.f32 %v101, %v400
    %v402 = vpop.f32.mrb[0].mxu0
    %v403 = vadd.f32 %v105, %v402
    %v404 = vpop.f32.mrb[0].mxu0
    %v405 = vpop.f32.mrb[0].mxu0
    %406 = vdwg.mxu0
    %v407 = vld [vmem:[%s0] sm:$0x3]
    %v408 = vpack.c.bf16 %v407, %v407
    %410 = vrot.lane.b32.xlu0 %v408, 116
    %v411 = vpop.permute.xlu0 %410
    %v413 = vsel %vm128, %v411, 0
    %415 = vmatprep.subr.bf16.mxu0 %v137
    %416 = vmatpush1.bf16.msra.mxu0 %v134
    %417 = vmatprep.subr.bf16.mxu0 0
    %418 = vmatpush1.bf16.msra.mxu0 0
    %419 = vmatprep.subr.bf16.mxu0 0
    %420 = vmatpush1.bf16.msra.mxu0 0
    %421 = vmatprep.subr.bf16.mxu0 0
    %422 = vmatpush1.bf16.msra.mxu0 0
    %423 = vmatprep.subr.bf16.mxu0 0
    %424 = vmatpush1.bf16.msra.mxu0 0
    %425 = vmatprep.subr.bf16.mxu0 0
    %426 = vmatpush1.bf16.msra.mxu0 0
    %427 = vmatprep.subr.bf16.mxu0 0
    %428 = vmatpush1.bf16.msra.mxu0 0
    %429 = vmatprep.subr.bf16.mxu0 0
    %430 = vmatpush1.bf16.msra.mxu0 0
    %431 = vmatprep.subr.bf16.mxu0 0
    %432 = vmatpush1.bf16.msra.mxu0 0
    %433 = vmatprep.subr.bf16.mxu0 0
    %434 = vmatpush1.bf16.msra.mxu0 0
    %435 = vmatprep.subr.bf16.mxu0 0
    %436 = vmatpush1.bf16.msra.mxu0 0
    %437 = vmatprep.subr.bf16.mxu0 0
    %438 = vmatpush1.bf16.msra.mxu0 0
    %439 = vmatprep.subr.bf16.mxu0 0
    %440 = vmatpush1.bf16.msra.mxu0 0
    %441 = vmatprep.subr.bf16.mxu0 0
    %442 = vmatpush1.bf16.msra.mxu0 0
    %443 = vmatprep.subr.bf16.mxu0 0
    %444 = vmatpush1.bf16.msra.mxu0 0
    %445 = vmatprep.subr.bf16.mxu0 0
    %446 = vmatpush1.bf16.msra.mxu0 0
    %447 = vmatprep.mubr.bf16.mxu0 0
    %448 = vmatmul.mubr.bf16.gmra.mrb[0].mxu0 %v413
    %v449 = vpop.f32.mrb[0].mxu0
    %v450 = vadd.f32 %v93, %v449
    %v451 = vpop.f32.mrb[0].mxu0
    %v452 = vadd.f32 %v97, %v451
    %v453 = vpop.f32.mrb[0].mxu0
    %v454 = vpop.f32.mrb[0].mxu0
    %455 = vdwg.mxu0
    %456 = vmatprep.subr.bf16.mxu0 %v143
    %457 = vmatpush1.bf16.msra.mxu0 %v140
    %458 = vmatprep.subr.bf16.mxu0 0
    %459 = vmatpush1.bf16.msra.mxu0 0
    %460 = vmatprep.subr.bf16.mxu0 0
    %461 = vmatpush1.bf16.msra.mxu0 0
    %462 = vmatprep.subr.bf16.mxu0 0
    %463 = vmatpush1.bf16.msra.mxu0 0
    %464 = vmatprep.subr.bf16.mxu0 0
    %465 = vmatpush1.bf16.msra.mxu0 0
    %466 = vmatprep.subr.bf16.mxu0 0
    %467 = vmatpush1.bf16.msra.mxu0 0
    %468 = vmatprep.subr.bf16.mxu0 0
    %469 = vmatpush1.bf16.msra.mxu0 0
    %470 = vmatprep.subr.bf16.mxu0 0
    %471 = vmatpush1.bf16.msra.mxu0 0
    %472 = vmatprep.subr.bf16.mxu0 0
    %473 = vmatpush1.bf16.msra.mxu0 0
    %474 = vmatprep.subr.bf16.mxu0 0
    %475 = vmatpush1.bf16.msra.mxu0 0
    %476 = vmatprep.subr.bf16.mxu0 0
    %477 = vmatpush1.bf16.msra.mxu0 0
    %478 = vmatprep.subr.bf16.mxu0 0
    %479 = vmatpush1.bf16.msra.mxu0 0
    %480 = vmatprep.subr.bf16.mxu0 0
    %481 = vmatpush1.bf16.msra.mxu0 0
    %482 = vmatprep.subr.bf16.mxu0 0
    %483 = vmatpush1.bf16.msra.mxu0 0
    %484 = vmatprep.subr.bf16.mxu0 0
    %485 = vmatpush1.bf16.msra.mxu0 0
    %486 = vmatprep.subr.bf16.mxu0 0
    %487 = vmatpush1.bf16.msra.mxu0 0
    %488 = vmatprep.mubr.bf16.mxu0 0
    %489 = vmatmul.mubr.bf16.gmra.mrb[0].mxu0 %v413
    %v490 = vpop.f32.mrb[0].mxu0
    %v491 = vadd.f32 %v101, %v490
    %v492 = vpop.f32.mrb[0].mxu0
    %v493 = vadd.f32 %v105, %v492
    %v494 = vpop.f32.mrb[0].mxu0
    %v495 = vpop.f32.mrb[0].mxu0
    %496 = vdwg.mxu0
    %v497 = vld [vmem:[%s0] sm:$0x3]
    %v498 = vpack.c.bf16 %v497, %v497
    %500 = vrot.lane.b32.xlu0 %v498, 112
    %v501 = vpop.permute.xlu0 %500
    %v503 = vsel %vm128, %v501, 0
    %505 = vmatprep.subr.bf16.mxu0 %v137
    %506 = vmatpush1.bf16.msra.mxu0 %v134
    %507 = vmatprep.subr.bf16.mxu0 0
    %508 = vmatpush1.bf16.msra.mxu0 0
    %509 = vmatprep.subr.bf16.mxu0 0
    %510 = vmatpush1.bf16.msra.mxu0 0
    %511 = vmatprep.subr.bf16.mxu0 0
    %512 = vmatpush1.bf16.msra.mxu0 0
    %513 = vmatprep.subr.bf16.mxu0 0
    %514 = vmatpush1.bf16.msra.mxu0 0
    %515 = vmatprep.subr.bf16.mxu0 0
    %516 = vmatpush1.bf16.msra.mxu0 0
    %517 = vmatprep.subr.bf16.mxu0 0
    %518 = vmatpush1.bf16.msra.mxu0 0
    %519 = vmatprep.subr.bf16.mxu0 0
    %520 = vmatpush1.bf16.msra.mxu0 0
    %521 = vmatprep.subr.bf16.mxu0 0
    %522 = vmatpush1.bf16.msra.mxu0 0
    %523 = vmatprep.subr.bf16.mxu0 0
    %524 = vmatpush1.bf16.msra.mxu0 0
    %525 = vmatprep.subr.bf16.mxu0 0
    %526 = vmatpush1.bf16.msra.mxu0 0
    %527 = vmatprep.subr.bf16.mxu0 0
    %528 = vmatpush1.bf16.msra.mxu0 0
    %529 = vmatprep.subr.bf16.mxu0 0
    %530 = vmatpush1.bf16.msra.mxu0 0
    %531 = vmatprep.subr.bf16.mxu0 0
    %532 = vmatpush1.bf16.msra.mxu0 0
    %533 = vmatprep.subr.bf16.mxu0 0
    %534 = vmatpush1.bf16.msra.mxu0 0
    %535 = vmatprep.subr.bf16.mxu0 0
    %536 = vmatpush1.bf16.msra.mxu0 0
    %537 = vmatprep.mubr.bf16.mxu0 0
    %538 = vmatmul.mubr.bf16.gmra.mrb[0].mxu0 %v503
    %v539 = vpop.f32.mrb[0].mxu0
    %v540 = vadd.f32 %v93, %v539
    %v541 = vpop.f32.mrb[0].mxu0
    %v542 = vadd.f32 %v97, %v541
    %v543 = vpop.f32.mrb[0].mxu0
    %v544 = vpop.f32.mrb[0].mxu0
    %545 = vdwg.mxu0
    %546 = vmatprep.subr.bf16.mxu0 %v143
    %547 = vmatpush1.bf16.msra.mxu0 %v140
    %548 = vmatprep.subr.bf16.mxu0 0
    %549 = vmatpush1.bf16.msra.mxu0 0
    %550 = vmatprep.subr.bf16.mxu0 0
    %551 = vmatpush1.bf16.msra.mxu0 0
    %552 = vmatprep.subr.bf16.mxu0 0
    %553 = vmatpush1.bf16.msra.mxu0 0
    %554 = vmatprep.subr.bf16.mxu0 0
    %555 = vmatpush1.bf16.msra.mxu0 0
    %556 = vmatprep.subr.bf16.mxu0 0
    %557 = vmatpush1.bf16.msra.mxu0 0
    %558 = vmatprep.subr.bf16.mxu0 0
    %559 = vmatpush1.bf16.msra.mxu0 0
    %560 = vmatprep.subr.bf16.mxu0 0
    %561 = vmatpush1.bf16.msra.mxu0 0
    %562 = vmatprep.subr.bf16.mxu0 0
    %563 = vmatpush1.bf16.msra.mxu0 0
    %564 = vmatprep.subr.bf16.mxu0 0
    %565 = vmatpush1.bf16.msra.mxu0 0
    %566 = vmatprep.subr.bf16.mxu0 0
    %567 = vmatpush1.bf16.msra.mxu0 0
    %568 = vmatprep.subr.bf16.mxu0 0
    %569 = vmatpush1.bf16.msra.mxu0 0
    %570 = vmatprep.subr.bf16.mxu0 0
    %571 = vmatpush1.bf16.msra.mxu0 0
    %572 = vmatprep.subr.bf16.mxu0 0
    %573 = vmatpush1.bf16.msra.mxu0 0
    %574 = vmatprep.subr.bf16.mxu0 0
    %575 = vmatpush1.bf16.msra.mxu0 0
    %576 = vmatprep.subr.bf16.mxu0 0
    %577 = vmatpush1.bf16.msra.mxu0 0
    %578 = vmatprep.mubr.bf16.mxu0 0
    %579 = vmatmul.mubr.bf16.gmra.mrb[0].mxu0 %v503
    %v580 = vpop.f32.mrb[0].mxu0
    %v581 = vadd.f32 %v101, %v580
    %v582 = vpop.f32.mrb[0].mxu0
    %v583 = vadd.f32 %v105, %v582
    %v584 = vpop.f32.mrb[0].mxu0
    %v585 = vpop.f32.mrb[0].mxu0
    %586 = vdwg.mxu0
    %v587 = vld [vmem:[%s0] sm:$0x3]
    %v588 = vpack.c.bf16 %v587, %v587
    %590 = vrot.lane.b32.xlu0 %v588, 108
    %v591 = vpop.permute.xlu0 %590
    %v593 = vsel %vm128, %v591, 0
    %595 = vmatprep.subr.bf16.mxu0 %v137
    %596 = vmatpush1.bf16.msra.mxu0 %v134
    %597 = vmatprep.subr.bf16.mxu0 0
    %598 = vmatpush1.bf16.msra.mxu0 0
    %599 = vmatprep.subr.bf16.mxu0 0
    %600 = vmatpush1.bf16.msra.mxu0 0
    %601 = vmatprep.subr.bf16.mxu0 0
    %602 = vmatpush1.bf16.msra.mxu0 0
    %603 = vmatprep.subr.bf16.mxu0 0
    %604 = vmatpush1.bf16.msra.mxu0 0
    %605 = vmatprep.subr.bf16.mxu0 0
    %606 = vmatpush1.bf16.msra.mxu0 0
    %607 = vmatprep.subr.bf16.mxu0 0
    %608 = vmatpush1.bf16.msra.mxu0 0
    %609 = vmatprep.subr.bf16.mxu0 0
    %610 = vmatpush1.bf16.msra.mxu0 0
    %611 = vmatprep.subr.bf16.mxu0 0
    %612 = vmatpush1.bf16.msra.mxu0 0
    %613 = vmatprep.subr.bf16.mxu0 0
    %614 = vmatpush1.bf16.msra.mxu0 0
    %615 = vmatprep.subr.bf16.mxu0 0
    %616 = vmatpush1.bf16.msra.mxu0 0
    %617 = vmatprep.subr.bf16.mxu0 0
    %618 = vmatpush1.bf16.msra.mxu0 0
    %619 = vmatprep.subr.bf16.mxu0 0
    %620 = vmatpush1.bf16.msra.mxu0 0
    %621 = vmatprep.subr.bf16.mxu0 0
    %622 = vmatpush1.bf16.msra.mxu0 0
    %623 = vmatprep.subr.bf16.mxu0 0
    %624 = vmatpush1.bf16.msra.mxu0 0
    %625 = vmatprep.subr.bf16.mxu0 0
    %626 = vmatpush1.bf16.msra.mxu0 0
    %627 = vmatprep.mubr.bf16.mxu0 0
    %628 = vmatmul.mubr.bf16.gmra.mrb[0].mxu0 %v593
    %v629 = vpop.f32.mrb[0].mxu0
    %v630 = vadd.f32 %v93, %v629
    %v631 = vpop.f32.mrb[0].mxu0
    %v632 = vadd.f32 %v97, %v631
    %v633 = vpop.f32.mrb[0].mxu0
    %v634 = vpop.f32.mrb[0].mxu0
    %635 = vdwg.mxu0
    %636 = vmatprep.subr.bf16.mxu0 %v143
    %637 = vmatpush1.bf16.msra.mxu0 %v140
    %638 = vmatprep.subr.bf16.mxu0 0
    %639 = vmatpush1.bf16.msra.mxu0 0
    %640 = vmatprep.subr.bf16.mxu0 0
    %641 = vmatpush1.bf16.msra.mxu0 0
    %642 = vmatprep.subr.bf16.mxu0 0
    %643 = vmatpush1.bf16.msra.mxu0 0
    %644 = vmatprep.subr.bf16.mxu0 0
    %645 = vmatpush1.bf16.msra.mxu0 0
    %646 = vmatprep.subr.bf16.mxu0 0
    %647 = vmatpush1.bf16.msra.mxu0 0
    %648 = vmatprep.subr.bf16.mxu0 0
    %649 = vmatpush1.bf16.msra.mxu0 0
    %650 = vmatprep.subr.bf16.mxu0 0
    %651 = vmatpush1.bf16.msra.mxu0 0
    %652 = vmatprep.subr.bf16.mxu0 0
    %653 = vmatpush1.bf16.msra.mxu0 0
    %654 = vmatprep.subr.bf16.mxu0 0
    %655 = vmatpush1.bf16.msra.mxu0 0
    %656 = vmatprep.subr.bf16.mxu0 0
    %657 = vmatpush1.bf16.msra.mxu0 0
    %658 = vmatprep.subr.bf16.mxu0 0
    %659 = vmatpush1.bf16.msra.mxu0 0
    %660 = vmatprep.subr.bf16.mxu0 0
    %661 = vmatpush1.bf16.msra.mxu0 0
    %662 = vmatprep.subr.bf16.mxu0 0
    %663 = vmatpush1.bf16.msra.mxu0 0
    %664 = vmatprep.subr.bf16.mxu0 0
    %665 = vmatpush1.bf16.msra.mxu0 0
    %666 = vmatprep.subr.bf16.mxu0 0
    %667 = vmatpush1.bf16.msra.mxu0 0
    %668 = vmatprep.mubr.bf16.mxu0 0
    %669 = vmatmul.mubr.bf16.gmra.mrb[0].mxu0 %v593
    %v670 = vpop.f32.mrb[0].mxu0
    %v671 = vadd.f32 %v101, %v670
    %v672 = vpop.f32.mrb[0].mxu0
    %v673 = vadd.f32 %v105, %v672
    %v674 = vpop.f32.mrb[0].mxu0
    %v675 = vpop.f32.mrb[0].mxu0
    %676 = vdwg.mxu0
    %v677 = vld [vmem:[%s0] sm:$0x3]
    %v678 = vpack.c.bf16 %v677, %v677
    %680 = vrot.lane.b32.xlu0 %v678, 104
    %v681 = vpop.permute.xlu0 %680
    %v683 = vsel %vm128, %v681, 0
    %685 = vmatprep.subr.bf16.mxu0 %v137
    %686 = vmatpush1.bf16.msra.mxu0 %v134
    %687 = vmatprep.subr.bf16.mxu0 0
    %688 = vmatpush1.bf16.msra.mxu0 0
    %689 = vmatprep.subr.bf16.mxu0 0
    %690 = vmatpush1.bf16.msra.mxu0 0
    %691 = vmatprep.subr.bf16.mxu0 0
    %692 = vmatpush1.bf16.msra.mxu0 0
    %693 = vmatprep.subr.bf16.mxu0 0
    %694 = vmatpush1.bf16.msra.mxu0 0
    %695 = vmatprep.subr.bf16.mxu0 0
    %696 = vmatpush1.bf16.msra.mxu0 0
    %697 = vmatprep.subr.bf16.mxu0 0
    %698 = vmatpush1.bf16.msra.mxu0 0
    %699 = vmatprep.subr.bf16.mxu0 0
    %700 = vmatpush1.bf16.msra.mxu0 0
    %701 = vmatprep.subr.bf16.mxu0 0
    %702 = vmatpush1.bf16.msra.mxu0 0
    %703 = vmatprep.subr.bf16.mxu0 0
    %704 = vmatpush1.bf16.msra.mxu0 0
    %705 = vmatprep.subr.bf16.mxu0 0
    %706 = vmatpush1.bf16.msra.mxu0 0
    %707 = vmatprep.subr.bf16.mxu0 0
    %708 = vmatpush1.bf16.msra.mxu0 0
    %709 = vmatprep.subr.bf16.mxu0 0
    %710 = vmatpush1.bf16.msra.mxu0 0
    %711 = vmatprep.subr.bf16.mxu0 0
    %712 = vmatpush1.bf16.msra.mxu0 0
    %713 = vmatprep.subr.bf16.mxu0 0
    %714 = vmatpush1.bf16.msra.mxu0 0
    %715 = vmatprep.subr.bf16.mxu0 0
    %716 = vmatpush1.bf16.msra.mxu0 0
    %717 = vmatprep.mubr.bf16.mxu0 0
    %718 = vmatmul.mubr.bf16.gmra.mrb[0].mxu0 %v683
    %v719 = vpop.f32.mrb[0].mxu0
    %v720 = vadd.f32 %v93, %v719
    %v721 = vpop.f32.mrb[0].mxu0
    %v722 = vadd.f32 %v97, %v721
    %v723 = vpop.f32.mrb[0].mxu0
    %v724 = vpop.f32.mrb[0].mxu0
    %725 = vdwg.mxu0
    %726 = vmatprep.subr.bf16.mxu0 %v143
    %727 = vmatpush1.bf16.msra.mxu0 %v140
    %728 = vmatprep.subr.bf16.mxu0 0
    %729 = vmatpush1.bf16.msra.mxu0 0
    %730 = vmatprep.subr.bf16.mxu0 0
    %731 = vmatpush1.bf16.msra.mxu0 0
    %732 = vmatprep.subr.bf16.mxu0 0
    %733 = vmatpush1.bf16.msra.mxu0 0
    %734 = vmatprep.subr.bf16.mxu0 0
    %735 = vmatpush1.bf16.msra.mxu0 0
    %736 = vmatprep.subr.bf16.mxu0 0
    %737 = vmatpush1.bf16.msra.mxu0 0
    %738 = vmatprep.subr.bf16.mxu0 0
    %739 = vmatpush1.bf16.msra.mxu0 0
    %740 = vmatprep.subr.bf16.mxu0 0
    %741 = vmatpush1.bf16.msra.mxu0 0
    %742 = vmatprep.subr.bf16.mxu0 0
    %743 = vmatpush1.bf16.msra.mxu0 0
    %744 = vmatprep.subr.bf16.mxu0 0
    %745 = vmatpush1.bf16.msra.mxu0 0
    %746 = vmatprep.subr.bf16.mxu0 0
    %747 = vmatpush1.bf16.msra.mxu0 0
    %748 = vmatprep.subr.bf16.mxu0 0
    %749 = vmatpush1.bf16.msra.mxu0 0
    %750 = vmatprep.subr.bf16.mxu0 0
    %751 = vmatpush1.bf16.msra.mxu0 0
    %752 = vmatprep.subr.bf16.mxu0 0
    %753 = vmatpush1.bf16.msra.mxu0 0
    %754 = vmatprep.subr.bf16.mxu0 0
    %755 = vmatpush1.bf16.msra.mxu0 0
    %756 = vmatprep.subr.bf16.mxu0 0
    %757 = vmatpush1.bf16.msra.mxu0 0
    %758 = vmatprep.mubr.bf16.mxu0 0
    %759 = vmatmul.mubr.bf16.gmra.mrb[0].mxu0 %v683
    %v760 = vpop.f32.mrb[0].mxu0
    %v761 = vadd.f32 %v101, %v760
    %v762 = vpop.f32.mrb[0].mxu0
    %v763 = vadd.f32 %v105, %v762
    %v764 = vpop.f32.mrb[0].mxu0
    %v765 = vpop.f32.mrb[0].mxu0
    %766 = vdwg.mxu0
    %v767 = vld [vmem:[%s0] sm:$0x3]
    %v768 = vpack.c.bf16 %v767, %v767
    %770 = vrot.lane.b32.xlu0 %v768, 100
    %v771 = vpop.permute.xlu0 %770
    %v773 = vsel %vm128, %v771, 0
    %775 = vmatprep.subr.bf16.mxu0 %v137
    %776 = vmatpush1.bf16.msra.mxu0 %v134
    %777 = vmatprep.subr.bf16.mxu0 0
    %778 = vmatpush1.bf16.msra.mxu0 0
    %779 = vmatprep.subr.bf16.mxu0 0
    %780 = vmatpush1.bf16.msra.mxu0 0
    %781 = vmatprep.subr.bf16.mxu0 0
    %782 = vmatpush1.bf16.msra.mxu0 0
    %783 = vmatprep.subr.bf16.mxu0 0
    %784 = vmatpush1.bf16.msra.mxu0 0
    %785 = vmatprep.subr.bf16.mxu0 0
    %786 = vmatpush1.bf16.msra.mxu0 0
    %787 = vmatprep.subr.bf16.mxu0 0
    %788 = vmatpush1.bf16.msra.mxu0 0
    %789 = vmatprep.subr.bf16.mxu0 0
    %790 = vmatpush1.bf16.msra.mxu0 0
    %791 = vmatprep.subr.bf16.mxu0 0
    %792 = vmatpush1.bf16.msra.mxu0 0
    %793 = vmatprep.subr.bf16.mxu0 0
    %794 = vmatpush1.bf16.msra.mxu0 0
    %795 = vmatprep.subr.bf16.mxu0 0
    %796 = vmatpush1.bf16.msra.mxu0 0
    %797 = vmatprep.subr.bf16.mxu0 0
    %798 = vmatpush1.bf16.msra.mxu0 0
    %799 = vmatprep.subr.bf16.mxu0 0
    %800 = vmatpush1.bf16.msra.mxu0 0
    %801 = vmatprep.subr.bf16.mxu0 0
    %802 = vmatpush1.bf16.msra.mxu0 0
    %803 = vmatprep.subr.bf16.mxu0 0
    %804 = vmatpush1.bf16.msra.mxu0 0
    %805 = vmatprep.subr.bf16.mxu0 0
    %806 = vmatpush1.bf16.msra.mxu0 0
    %807 = vmatprep.mubr.bf16.mxu0 0
    %808 = vmatmul.mubr.bf16.gmra.mrb[0].mxu0 %v773
    %v809 = vpop.f32.mrb[0].mxu0
    %v810 = vadd.f32 %v93, %v809
    %v811 = vpop.f32.mrb[0].mxu0
    %v812 = vadd.f32 %v97, %v811
    %v813 = vpop.f32.mrb[0].mxu0
    %v814 = vpop.f32.mrb[0].mxu0
    %815 = vdwg.mxu0
    %816 = vmatprep.subr.bf16.mxu0 %v143
    %817 = vmatpush1.bf16.msra.mxu0 %v140
    %818 = vmatprep.subr.bf16.mxu0 0
    %819 = vmatpush1.bf16.msra.mxu0 0
    %820 = vmatprep.subr.bf16.mxu0 0
    %821 = vmatpush1.bf16.msra.mxu0 0
    %822 = vmatprep.subr.bf16.mxu0 0
    %823 = vmatpush1.bf16.msra.mxu0 0
    %824 = vmatprep.subr.bf16.mxu0 0
    %825 = vmatpush1.bf16.msra.mxu0 0
    %826 = vmatprep.subr.bf16.mxu0 0
    %827 = vmatpush1.bf16.msra.mxu0 0
    %828 = vmatprep.subr.bf16.mxu0 0
    %829 = vmatpush1.bf16.msra.mxu0 0
    %830 = vmatprep.subr.bf16.mxu0 0
    %831 = vmatpush1.bf16.msra.mxu0 0
    %832 = vmatprep.subr.bf16.mxu0 0
    %833 = vmatpush1.bf16.msra.mxu0 0
    %834 = vmatprep.subr.bf16.mxu0 0
    %835 = vmatpush1.bf16.msra.mxu0 0
    %836 = vmatprep.subr.bf16.mxu0 0
    %837 = vmatpush1.bf16.msra.mxu0 0
    %838 = vmatprep.subr.bf16.mxu0 0
    %839 = vmatpush1.bf16.msra.mxu0 0
    %840 = vmatprep.subr.bf16.mxu0 0
    %841 = vmatpush1.bf16.msra.mxu0 0
    %842 = vmatprep.subr.bf16.mxu0 0
    %843 = vmatpush1.bf16.msra.mxu0 0
    %844 = vmatprep.subr.bf16.mxu0 0
    %845 = vmatpush1.bf16.msra.mxu0 0
    %846 = vmatprep.subr.bf16.mxu0 0
    %847 = vmatpush1.bf16.msra.mxu0 0
    %848 = vmatprep.mubr.bf16.mxu0 0
    %849 = vmatmul.mubr.bf16.gmra.mrb[0].mxu0 %v773
    %v850 = vpop.f32.mrb[0].mxu0
    %v851 = vadd.f32 %v101, %v850
    %v852 = vpop.f32.mrb[0].mxu0
    %v853 = vadd.f32 %v105, %v852
    %v854 = vpop.f32.mrb[0].mxu0
    %v855 = vpop.f32.mrb[0].mxu0
    %856 = vdwg.mxu0
    %v889 = vunpack.c.l.b16 %v54
    %v890 = vunpack.c.h.b16 %v54
    %v891 = vunpack.c.l.b16 %v55
    %v892 = vunpack.c.h.b16 %v55
    %v893 = vunpack.c.l.b16 %v56
    %v894 = vunpack.c.h.b16 %v56
    %v895 = vunpack.c.l.b16 %v57
    %v896 = vunpack.c.h.b16 %v57
    %v897 = vunpack.c.l.b16 %v58
    %v898 = vunpack.c.h.b16 %v58
    %v899 = vunpack.c.l.b16 %v59
    %v900 = vunpack.c.h.b16 %v59
    %v901 = vunpack.c.l.b16 %v60
    %v902 = vunpack.c.h.b16 %v60
    %v903 = vunpack.c.l.b16 %v61
    %v904 = vunpack.c.h.b16 %v61
    %v905 = vunpack.c.l.b16 %v62
    %v906 = vunpack.c.h.b16 %v62
    %v907 = vunpack.c.l.b16 %v63
    %v908 = vunpack.c.h.b16 %v63
    %v909 = vunpack.c.l.b16 %v64
    %v910 = vunpack.c.h.b16 %v64
    %v911 = vunpack.c.l.b16 %v65
    %v912 = vunpack.c.h.b16 %v65
    %v913 = vunpack.c.l.b16 %v66
    %v914 = vunpack.c.h.b16 %v66
    %v915 = vunpack.c.l.b16 %v67
    %v916 = vunpack.c.h.b16 %v67
    %v917 = vunpack.c.l.b16 %v68
    %v918 = vunpack.c.h.b16 %v68
    %v919 = vunpack.c.l.b16 %v69
    %v920 = vunpack.c.h.b16 %v69
    %v921 = vunpack.c.l.b16 %v70
    %v922 = vunpack.c.h.b16 %v70
    %v923 = vunpack.c.l.b16 %v71
    %v924 = vunpack.c.h.b16 %v71
    %v925 = vunpack.c.l.b16 %v72
    %v926 = vunpack.c.h.b16 %v72
    %v927 = vunpack.c.l.b16 %v73
    %v928 = vunpack.c.h.b16 %v73
    %v929 = vunpack.c.l.b16 %v74
    %v930 = vunpack.c.h.b16 %v74
    %v931 = vunpack.c.l.b16 %v75
    %v932 = vunpack.c.h.b16 %v75
    %v933 = vunpack.c.l.b16 %v76
    %v934 = vunpack.c.h.b16 %v76
    %v935 = vunpack.c.l.b16 %v77
    %v936 = vunpack.c.h.b16 %v77
    %v937 = vunpack.c.l.b16 %v78
    %v938 = vunpack.c.h.b16 %v78
    %v939 = vunpack.c.l.b16 %v79
    %v940 = vunpack.c.h.b16 %v79
    %v941 = vunpack.c.l.b16 %v80
    %v942 = vunpack.c.h.b16 %v80
    %v943 = vunpack.c.l.b16 %v81
    %v944 = vunpack.c.h.b16 %v81
    %v945 = vunpack.c.l.b16 %v82
    %v946 = vunpack.c.h.b16 %v82
    %v947 = vunpack.c.l.b16 %v83
    %v948 = vunpack.c.h.b16 %v83
    %v949 = vunpack.c.l.b16 %v84
    %v950 = vunpack.c.h.b16 %v84
    %v951 = vunpack.c.l.b16 %v85
    %v952 = vunpack.c.h.b16 %v85
    %v953 = vpack.c.b16 %v893, %v889
    %v954 = vpack.c.b16 %v894, %v890
    %v955 = vpack.c.b16 %v895, %v891
    %v956 = vpack.c.b16 %v896, %v892
    %v957 = vpack.c.b16 %v901, %v897
    %v958 = vpack.c.b16 %v902, %v898
    %v959 = vpack.c.b16 %v903, %v899
    %v960 = vpack.c.b16 %v904, %v900
    %v961 = vpack.c.b16 %v909, %v905
    %v962 = vpack.c.b16 %v910, %v906
    %v963 = vpack.c.b16 %v911, %v907
    %v964 = vpack.c.b16 %v912, %v908
    %v965 = vpack.c.b16 %v917, %v913
    %v966 = vpack.c.b16 %v918, %v914
    %v967 = vpack.c.b16 %v919, %v915
    %v968 = vpack.c.b16 %v920, %v916
    %v969 = vpack.c.b16 %v925, %v921
    %v970 = vpack.c.b16 %v926, %v922
    %v971 = vpack.c.b16 %v927, %v923
    %v972 = vpack.c.b16 %v928, %v924
    %v973 = vpack.c.b16 %v933, %v929
    %v974 = vpack.c.b16 %v934, %v930
    %v975 = vpack.c.b16 %v935, %v931
    %v976 = vpack.c.b16 %v936, %v932
    %v977 = vpack.c.b16 %v941, %v937
    %v978 = vpack.c.b16 %v942, %v938
    %v979 = vpack.c.b16 %v943, %v939
    %v980 = vpack.c.b16 %v944, %v940
    %v981 = vpack.c.b16 %v949, %v945
    %v982 = vpack.c.b16 %v950, %v946
    %v983 = vpack.c.b16 %v951, %v947
    %v984 = vpack.c.b16 %v952, %v948
    %1017 = vmatprep.subr.bf16.mxu0 %v954
    %1018 = vmatpush1.bf16.msra.mxu0 %v953
    %1019 = vmatprep.subr.bf16.mxu0 %v958
    %1020 = vmatpush1.bf16.msra.mxu0 %v957
    %1021 = vmatprep.subr.bf16.mxu0 %v962
    %1022 = vmatpush1.bf16.msra.mxu0 %v961
    %1023 = vmatprep.subr.bf16.mxu0 %v966
    %1024 = vmatpush1.bf16.msra.mxu0 %v965
    %1025 = vmatprep.subr.bf16.mxu0 %v970
    %1026 = vmatpush1.bf16.msra.mxu0 %v969
    %1027 = vmatprep.subr.bf16.mxu0 %v974
    %1028 = vmatpush1.bf16.msra.mxu0 %v973
    %1029 = vmatprep.subr.bf16.mxu0 %v978
    %1030 = vmatpush1.bf16.msra.mxu0 %v977
    %1031 = vmatprep.subr.bf16.mxu0 %v982
    %1032 = vmatpush1.bf16.msra.mxu0 %v981
    %1033 = vmatprep.subr.bf16.mxu0 0
    %1034 = vmatpush1.bf16.msra.mxu0 0
    %1035 = vmatprep.subr.bf16.mxu0 0
    %1036 = vmatpush1.bf16.msra.mxu0 0
    %1037 = vmatprep.subr.bf16.mxu0 0
    %1038 = vmatpush1.bf16.msra.mxu0 0
    %1039 = vmatprep.subr.bf16.mxu0 0
    %1040 = vmatpush1.bf16.msra.mxu0 0
    %1041 = vmatprep.subr.bf16.mxu0 0
    %1042 = vmatpush1.bf16.msra.mxu0 0
    %1043 = vmatprep.subr.bf16.mxu0 0
    %1044 = vmatpush1.bf16.msra.mxu0 0
    %1045 = vmatprep.subr.bf16.mxu0 0
    %1046 = vmatpush1.bf16.msra.mxu0 0
    %1047 = vmatprep.subr.bf16.mxu0 0
    %1048 = vmatpush1.bf16.msra.mxu0 0
    %1049 = vmatprep.mubr.bf16.mxu0 0
    %1050 = vmatmul.mubr.bf16.gmra.mrb[0].mxu0 0
    %v1051 = vpop.f32.mrb[0].mxu0
    %v1052 = vadd.f32 0.0, %v1051
    %v1053 = vpop.f32.mrb[0].mxu0
    %v1054 = vadd.f32 0.0, %v1053
    %v1055 = vpop.f32.mrb[0].mxu0
    %v1056 = vpop.f32.mrb[0].mxu0
    %1057 = vdwg.mxu0
    %1058 = vmatprep.subr.bf16.mxu0 %v956
    %1059 = vmatpush1.bf16.msra.mxu0 %v955
    %1060 = vmatprep.subr.bf16.mxu0 %v960
    %1061 = vmatpush1.bf16.msra.mxu0 %v959
    %1062 = vmatprep.subr.bf16.mxu0 %v964
    %1063 = vmatpush1.bf16.msra.mxu0 %v963
    %1064 = vmatprep.subr.bf16.mxu0 %v968
    %1065 = vmatpush1.bf16.msra.mxu0 %v967
    %1066 = vmatprep.subr.bf16.mxu0 %v972
    %1067 = vmatpush1.bf16.msra.mxu0 %v971
    %1068 = vmatprep.subr.bf16.mxu0 %v976
    %1069 = vmatpush1.bf16.msra.mxu0 %v975
    %1070 = vmatprep.subr.bf16.mxu0 %v980
    %1071 = vmatpush1.bf16.msra.mxu0 %v979
    %1072 = vmatprep.subr.bf16.mxu0 %v984
    %1073 = vmatpush1.bf16.msra.mxu0 %v983
    %1074 = vmatprep.subr.bf16.mxu0 0
    %1075 = vmatpush1.bf16.msra.mxu0 0
    %1076 = vmatprep.subr.bf16.mxu0 0
    %1077 = vmatpush1.bf16.msra.mxu0 0
    %1078 = vmatprep.subr.bf16.mxu0 0
    %1079 = vmatpush1.bf16.msra.mxu0 0
    %1080 = vmatprep.subr.bf16.mxu0 0
    %1081 = vmatpush1.bf16.msra.mxu0 0
    %1082 = vmatprep.subr.bf16.mxu0 0
    %1083 = vmatpush1.bf16.msra.mxu0 0
    %1084 = vmatprep.subr.bf16.mxu0 0
    %1085 = vmatpush1.bf16.msra.mxu0 0
    %1086 = vmatprep.subr.bf16.mxu0 0
    %1087 = vmatpush1.bf16.msra.mxu0 0
    %1088 = vmatprep.subr.bf16.mxu0 0
    %1089 = vmatpush1.bf16.msra.mxu0 0
    %1090 = vmatprep.mubr.bf16.mxu0 0
    %1091 = vmatmul.mubr.bf16.gmra.mrb[0].mxu0 0
    %v1092 = vpop.f32.mrb[0].mxu0
    %v1093 = vadd.f32 0.0, %v1092
    %v1094 = vpop.f32.mrb[0].mxu0
    %v1095 = vadd.f32 0.0, %v1094
    %v1096 = vpop.f32.mrb[0].mxu0
    %v1097 = vpop.f32.mrb[0].mxu0
    %1098 = vdwg.mxu0
    %v1099 = vadd.f32 %v180, %v1052
    %v1100 = vadd.f32 %v182, %v1054
    %v1101 = vadd.f32 %v221, %v1093
    %v1102 = vadd.f32 %v223, %v1095
    %v1103 = vmul.f32 %v1099, 0.5
    %v1104 = vmul.f32 %v1100, 0.5
    %v1105 = vmul.f32 %v1101, 0.5
    %v1106 = vtanh.pop %v1103
    %v1107 = vtanh.pop %v1104
    %v1108 = vtanh.pop %v1105
    %v1109 = vmul.f32 %v1106, 0.5
    %v1110 = vmul.f32 %v1107, 0.5
    %v1111 = vmul.f32 %v1108, 0.5
    %v1112 = vadd.f32 %v1109, 0.5
    %v1113 = vadd.f32 %v1110, 0.5
    %v1114 = vadd.f32 %v1111, 0.5
    %v1115 = vtanh.pop %v1102
    %v1116 = vmul.f32 %v1113, 0.0
    %v1117 = vmul.f32 %v1112, %v1115
    %v1118 = vadd.f32 %v1116, %v1117
    %v1119 = vtanh.pop %v1118
    %v1120 = vmul.f32 %v1114, %v1119
    %v1121 = vpack.c.bf16 %v1120, %v1120
    %1122 = vmatprep.subr.bf16.mxu0 %v954
    %1123 = vmatpush1.bf16.msra.mxu0 %v953
    %1124 = vmatprep.subr.bf16.mxu0 %v958
    %1125 = vmatpush1.bf16.msra.mxu0 %v957
    %1126 = vmatprep.subr.bf16.mxu0 %v962
    %1127 = vmatpush1.bf16.msra.mxu0 %v961
    %1128 = vmatprep.subr.bf16.mxu0 %v966
    %1129 = vmatpush1.bf16.msra.mxu0 %v965
    %1130 = vmatprep.subr.bf16.mxu0 %v970
    %1131 = vmatpush1.bf16.msra.mxu0 %v969
    %1132 = vmatprep.subr.bf16.mxu0 %v974
    %1133 = vmatpush1.bf16.msra.mxu0 %v973
    %1134 = vmatprep.subr.bf16.mxu0 %v978
    %1135 = vmatpush1.bf16.msra.mxu0 %v977
    %1136 = vmatprep.subr.bf16.mxu0 %v982
    %1137 = vmatpush1.bf16.msra.mxu0 %v981
    %1138 = vmatprep.subr.bf16.mxu0 0
    %1139 = vmatpush1.bf16.msra.mxu0 0
    %1140 = vmatprep.subr.bf16.mxu0 0
    %1141 = vmatpush1.bf16.msra.mxu0 0
    %1142 = vmatprep.subr.bf16.mxu0 0
    %1143 = vmatpush1.bf16.msra.mxu0 0
    %1144 = vmatprep.subr.bf16.mxu0 0
    %1145 = vmatpush1.bf16.msra.mxu0 0
    %1146 = vmatprep.subr.bf16.mxu0 0
    %1147 = vmatpush1.bf16.msra.mxu0 0
    %1148 = vmatprep.subr.bf16.mxu0 0
    %1149 = vmatpush1.bf16.msra.mxu0 0
    %1150 = vmatprep.subr.bf16.mxu0 0
    %1151 = vmatpush1.bf16.msra.mxu0 0
    %1152 = vmatprep.subr.bf16.mxu0 0
    %1153 = vmatpush1.bf16.msra.mxu0 0
    %1154 = vmatprep.mubr.bf16.mxu0 0
    %1155 = vmatmul.mubr.bf16.gmra.mrb[0].mxu0 %v1121
    %v1156 = vpop.f32.mrb[0].mxu0
    %v1157 = vadd.f32 0.0, %v1156
    %v1158 = vpop.f32.mrb[0].mxu0
    %v1159 = vadd.f32 0.0, %v1158
    %v1160 = vpop.f32.mrb[0].mxu0
    %v1161 = vpop.f32.mrb[0].mxu0
    %1162 = vdwg.mxu0
    %1163 = vmatprep.subr.bf16.mxu0 %v956
    %1164 = vmatpush1.bf16.msra.mxu0 %v955
    %1165 = vmatprep.subr.bf16.mxu0 %v960
    %1166 = vmatpush1.bf16.msra.mxu0 %v959
    %1167 = vmatprep.subr.bf16.mxu0 %v964
    %1168 = vmatpush1.bf16.msra.mxu0 %v963
    %1169 = vmatprep.subr.bf16.mxu0 %v968
    %1170 = vmatpush1.bf16.msra.mxu0 %v967
    %1171 = vmatprep.subr.bf16.mxu0 %v972
    %1172 = vmatpush1.bf16.msra.mxu0 %v971
    %1173 = vmatprep.subr.bf16.mxu0 %v976
    %1174 = vmatpush1.bf16.msra.mxu0 %v975
    %1175 = vmatprep.subr.bf16.mxu0 %v980
    %1176 = vmatpush1.bf16.msra.mxu0 %v979
    %1177 = vmatprep.subr.bf16.mxu0 %v984
    %1178 = vmatpush1.bf16.msra.mxu0 %v983
    %1179 = vmatprep.subr.bf16.mxu0 0
    %1180 = vmatpush1.bf16.msra.mxu0 0
    %1181 = vmatprep.subr.bf16.mxu0 0
    %1182 = vmatpush1.bf16.msra.mxu0 0
    %1183 = vmatprep.subr.bf16.mxu0 0
    %1184 = vmatpush1.bf16.msra.mxu0 0
    %1185 = vmatprep.subr.bf16.mxu0 0
    %1186 = vmatpush1.bf16.msra.mxu0 0
    %1187 = vmatprep.subr.bf16.mxu0 0
    %1188 = vmatpush1.bf16.msra.mxu0 0
    %1189 = vmatprep.subr.bf16.mxu0 0
    %1190 = vmatpush1.bf16.msra.mxu0 0
    %1191 = vmatprep.subr.bf16.mxu0 0
    %1192 = vmatpush1.bf16.msra.mxu0 0
    %1193 = vmatprep.subr.bf16.mxu0 0
    %1194 = vmatpush1.bf16.msra.mxu0 0
    %1195 = vmatprep.mubr.bf16.mxu0 0
    %1196 = vmatmul.mubr.bf16.gmra.mrb[0].mxu0 %v1121
    %v1197 = vpop.f32.mrb[0].mxu0
    %v1198 = vadd.f32 0.0, %v1197
    %v1199 = vpop.f32.mrb[0].mxu0
    %v1200 = vadd.f32 0.0, %v1199
    %v1201 = vpop.f32.mrb[0].mxu0
    %v1202 = vpop.f32.mrb[0].mxu0
    %1203 = vdwg.mxu0
    %v1204 = vadd.f32 %v270, %v1157
    %v1205 = vadd.f32 %v272, %v1159
    %v1206 = vadd.f32 %v311, %v1198
    %v1207 = vadd.f32 %v313, %v1200
    %v1208 = vmul.f32 %v1204, 0.5
    %v1209 = vmul.f32 %v1205, 0.5
    %v1210 = vmul.f32 %v1206, 0.5
    %v1211 = vtanh.pop %v1208
    %v1212 = vtanh.pop %v1209
    %v1213 = vtanh.pop %v1210
    %v1214 = vmul.f32 %v1211, 0.5
    %v1215 = vmul.f32 %v1212, 0.5
    %v1216 = vmul.f32 %v1213, 0.5
    %v1217 = vadd.f32 %v1214, 0.5
    %v1218 = vadd.f32 %v1215, 0.5
    %v1219 = vadd.f32 %v1216, 0.5
    %v1220 = vtanh.pop %v1207
    %v1221 = vmul.f32 %v1218, %v1118
    %v1222 = vmul.f32 %v1217, %v1220
    %v1223 = vadd.f32 %v1221, %v1222
    %v1224 = vtanh.pop %v1223
    %v1225 = vmul.f32 %v1219, %v1224
    %v1226 = vpack.c.bf16 %v1225, %v1225
    %1227 = vmatprep.subr.bf16.mxu0 %v954
    %1228 = vmatpush1.bf16.msra.mxu0 %v953
    %1229 = vmatprep.subr.bf16.mxu0 %v958
    %1230 = vmatpush1.bf16.msra.mxu0 %v957
    %1231 = vmatprep.subr.bf16.mxu0 %v962
    %1232 = vmatpush1.bf16.msra.mxu0 %v961
    %1233 = vmatprep.subr.bf16.mxu0 %v966
    %1234 = vmatpush1.bf16.msra.mxu0 %v965
    %1235 = vmatprep.subr.bf16.mxu0 %v970
    %1236 = vmatpush1.bf16.msra.mxu0 %v969
    %1237 = vmatprep.subr.bf16.mxu0 %v974
    %1238 = vmatpush1.bf16.msra.mxu0 %v973
    %1239 = vmatprep.subr.bf16.mxu0 %v978
    %1240 = vmatpush1.bf16.msra.mxu0 %v977
    %1241 = vmatprep.subr.bf16.mxu0 %v982
    %1242 = vmatpush1.bf16.msra.mxu0 %v981
    %1243 = vmatprep.subr.bf16.mxu0 0
    %1244 = vmatpush1.bf16.msra.mxu0 0
    %1245 = vmatprep.subr.bf16.mxu0 0
    %1246 = vmatpush1.bf16.msra.mxu0 0
    %1247 = vmatprep.subr.bf16.mxu0 0
    %1248 = vmatpush1.bf16.msra.mxu0 0
    %1249 = vmatprep.subr.bf16.mxu0 0
    %1250 = vmatpush1.bf16.msra.mxu0 0
    %1251 = vmatprep.subr.bf16.mxu0 0
    %1252 = vmatpush1.bf16.msra.mxu0 0
    %1253 = vmatprep.subr.bf16.mxu0 0
    %1254 = vmatpush1.bf16.msra.mxu0 0
    %1255 = vmatprep.subr.bf16.mxu0 0
    %1256 = vmatpush1.bf16.msra.mxu0 0
    %1257 = vmatprep.subr.bf16.mxu0 0
    %1258 = vmatpush1.bf16.msra.mxu0 0
    %1259 = vmatprep.mubr.bf16.mxu0 0
    %1260 = vmatmul.mubr.bf16.gmra.mrb[0].mxu0 %v1226
    %v1261 = vpop.f32.mrb[0].mxu0
    %v1262 = vadd.f32 0.0, %v1261
    %v1263 = vpop.f32.mrb[0].mxu0
    %v1264 = vadd.f32 0.0, %v1263
    %v1265 = vpop.f32.mrb[0].mxu0
    %v1266 = vpop.f32.mrb[0].mxu0
    %1267 = vdwg.mxu0
    %1268 = vmatprep.subr.bf16.mxu0 %v956
    %1269 = vmatpush1.bf16.msra.mxu0 %v955
    %1270 = vmatprep.subr.bf16.mxu0 %v960
    %1271 = vmatpush1.bf16.msra.mxu0 %v959
    %1272 = vmatprep.subr.bf16.mxu0 %v964
    %1273 = vmatpush1.bf16.msra.mxu0 %v963
    %1274 = vmatprep.subr.bf16.mxu0 %v968
    %1275 = vmatpush1.bf16.msra.mxu0 %v967
    %1276 = vmatprep.subr.bf16.mxu0 %v972
    %1277 = vmatpush1.bf16.msra.mxu0 %v971
    %1278 = vmatprep.subr.bf16.mxu0 %v976
    %1279 = vmatpush1.bf16.msra.mxu0 %v975
    %1280 = vmatprep.subr.bf16.mxu0 %v980
    %1281 = vmatpush1.bf16.msra.mxu0 %v979
    %1282 = vmatprep.subr.bf16.mxu0 %v984
    %1283 = vmatpush1.bf16.msra.mxu0 %v983
    %1284 = vmatprep.subr.bf16.mxu0 0
    %1285 = vmatpush1.bf16.msra.mxu0 0
    %1286 = vmatprep.subr.bf16.mxu0 0
    %1287 = vmatpush1.bf16.msra.mxu0 0
    %1288 = vmatprep.subr.bf16.mxu0 0
    %1289 = vmatpush1.bf16.msra.mxu0 0
    %1290 = vmatprep.subr.bf16.mxu0 0
    %1291 = vmatpush1.bf16.msra.mxu0 0
    %1292 = vmatprep.subr.bf16.mxu0 0
    %1293 = vmatpush1.bf16.msra.mxu0 0
    %1294 = vmatprep.subr.bf16.mxu0 0
    %1295 = vmatpush1.bf16.msra.mxu0 0
    %1296 = vmatprep.subr.bf16.mxu0 0
    %1297 = vmatpush1.bf16.msra.mxu0 0
    %1298 = vmatprep.subr.bf16.mxu0 0
    %1299 = vmatpush1.bf16.msra.mxu0 0
    %1300 = vmatprep.mubr.bf16.mxu0 0
    %1301 = vmatmul.mubr.bf16.gmra.mrb[0].mxu0 %v1226
    %v1302 = vpop.f32.mrb[0].mxu0
    %v1303 = vadd.f32 0.0, %v1302
    %v1304 = vpop.f32.mrb[0].mxu0
    %v1305 = vadd.f32 0.0, %v1304
    %v1306 = vpop.f32.mrb[0].mxu0
    %v1307 = vpop.f32.mrb[0].mxu0
    %1308 = vdwg.mxu0
    %v1309 = vadd.f32 %v360, %v1262
    %v1310 = vadd.f32 %v362, %v1264
    %v1311 = vadd.f32 %v401, %v1303
    %v1312 = vadd.f32 %v403, %v1305
    %v1313 = vmul.f32 %v1309, 0.5
    %v1314 = vmul.f32 %v1310, 0.5
    %v1315 = vmul.f32 %v1311, 0.5
    %v1316 = vtanh.pop %v1313
    %v1317 = vtanh.pop %v1314
    %v1318 = vtanh.pop %v1315
    %v1319 = vmul.f32 %v1316, 0.5
    %v1320 = vmul.f32 %v1317, 0.5
    %v1321 = vmul.f32 %v1318, 0.5
    %v1322 = vadd.f32 %v1319, 0.5
    %v1323 = vadd.f32 %v1320, 0.5
    %v1324 = vadd.f32 %v1321, 0.5
    %v1325 = vtanh.pop %v1312
    %v1326 = vmul.f32 %v1323, %v1223
    %v1327 = vmul.f32 %v1322, %v1325
    %v1328 = vadd.f32 %v1326, %v1327
    %v1329 = vtanh.pop %v1328
    %v1330 = vmul.f32 %v1324, %v1329
    %v1331 = vpack.c.bf16 %v1330, %v1330
    %1332 = vmatprep.subr.bf16.mxu0 %v954
    %1333 = vmatpush1.bf16.msra.mxu0 %v953
    %1334 = vmatprep.subr.bf16.mxu0 %v958
    %1335 = vmatpush1.bf16.msra.mxu0 %v957
    %1336 = vmatprep.subr.bf16.mxu0 %v962
    %1337 = vmatpush1.bf16.msra.mxu0 %v961
    %1338 = vmatprep.subr.bf16.mxu0 %v966
    %1339 = vmatpush1.bf16.msra.mxu0 %v965
    %1340 = vmatprep.subr.bf16.mxu0 %v970
    %1341 = vmatpush1.bf16.msra.mxu0 %v969
    %1342 = vmatprep.subr.bf16.mxu0 %v974
    %1343 = vmatpush1.bf16.msra.mxu0 %v973
    %1344 = vmatprep.subr.bf16.mxu0 %v978
    %1345 = vmatpush1.bf16.msra.mxu0 %v977
    %1346 = vmatprep.subr.bf16.mxu0 %v982
    %1347 = vmatpush1.bf16.msra.mxu0 %v981
    %1348 = vmatprep.subr.bf16.mxu0 0
    %1349 = vmatpush1.bf16.msra.mxu0 0
    %1350 = vmatprep.subr.bf16.mxu0 0
    %1351 = vmatpush1.bf16.msra.mxu0 0
    %1352 = vmatprep.subr.bf16.mxu0 0
    %1353 = vmatpush1.bf16.msra.mxu0 0
    %1354 = vmatprep.subr.bf16.mxu0 0
    %1355 = vmatpush1.bf16.msra.mxu0 0
    %1356 = vmatprep.subr.bf16.mxu0 0
    %1357 = vmatpush1.bf16.msra.mxu0 0
    %1358 = vmatprep.subr.bf16.mxu0 0
    %1359 = vmatpush1.bf16.msra.mxu0 0
    %1360 = vmatprep.subr.bf16.mxu0 0
    %1361 = vmatpush1.bf16.msra.mxu0 0
    %1362 = vmatprep.subr.bf16.mxu0 0
    %1363 = vmatpush1.bf16.msra.mxu0 0
    %1364 = vmatprep.mubr.bf16.mxu0 0
    %1365 = vmatmul.mubr.bf16.gmra.mrb[0].mxu0 %v1331
    %v1366 = vpop.f32.mrb[0].mxu0
    %v1367 = vadd.f32 0.0, %v1366
    %v1368 = vpop.f32.mrb[0].mxu0
    %v1369 = vadd.f32 0.0, %v1368
    %v1370 = vpop.f32.mrb[0].mxu0
    %v1371 = vpop.f32.mrb[0].mxu0
    %1372 = vdwg.mxu0
    %1373 = vmatprep.subr.bf16.mxu0 %v956
    %1374 = vmatpush1.bf16.msra.mxu0 %v955
    %1375 = vmatprep.subr.bf16.mxu0 %v960
    %1376 = vmatpush1.bf16.msra.mxu0 %v959
    %1377 = vmatprep.subr.bf16.mxu0 %v964
    %1378 = vmatpush1.bf16.msra.mxu0 %v963
    %1379 = vmatprep.subr.bf16.mxu0 %v968
    %1380 = vmatpush1.bf16.msra.mxu0 %v967
    %1381 = vmatprep.subr.bf16.mxu0 %v972
    %1382 = vmatpush1.bf16.msra.mxu0 %v971
    %1383 = vmatprep.subr.bf16.mxu0 %v976
    %1384 = vmatpush1.bf16.msra.mxu0 %v975
    %1385 = vmatprep.subr.bf16.mxu0 %v980
    %1386 = vmatpush1.bf16.msra.mxu0 %v979
    %1387 = vmatprep.subr.bf16.mxu0 %v984
    %1388 = vmatpush1.bf16.msra.mxu0 %v983
    %1389 = vmatprep.subr.bf16.mxu0 0
    %1390 = vmatpush1.bf16.msra.mxu0 0
    %1391 = vmatprep.subr.bf16.mxu0 0
    %1392 = vmatpush1.bf16.msra.mxu0 0
    %1393 = vmatprep.subr.bf16.mxu0 0
    %1394 = vmatpush1.bf16.msra.mxu0 0
    %1395 = vmatprep.subr.bf16.mxu0 0
    %1396 = vmatpush1.bf16.msra.mxu0 0
    %1397 = vmatprep.subr.bf16.mxu0 0
    %1398 = vmatpush1.bf16.msra.mxu0 0
    %1399 = vmatprep.subr.bf16.mxu0 0
    %1400 = vmatpush1.bf16.msra.mxu0 0
    %1401 = vmatprep.subr.bf16.mxu0 0
    %1402 = vmatpush1.bf16.msra.mxu0 0
    %1403 = vmatprep.subr.bf16.mxu0 0
    %1404 = vmatpush1.bf16.msra.mxu0 0
    %1405 = vmatprep.mubr.bf16.mxu0 0
    %1406 = vmatmul.mubr.bf16.gmra.mrb[0].mxu0 %v1331
    %v1407 = vpop.f32.mrb[0].mxu0
    %v1408 = vadd.f32 0.0, %v1407
    %v1409 = vpop.f32.mrb[0].mxu0
    %v1410 = vadd.f32 0.0, %v1409
    %v1411 = vpop.f32.mrb[0].mxu0
    %v1412 = vpop.f32.mrb[0].mxu0
    %1413 = vdwg.mxu0
    %v1414 = vadd.f32 %v450, %v1367
    %v1415 = vadd.f32 %v452, %v1369
    %v1416 = vadd.f32 %v491, %v1408
    %v1417 = vadd.f32 %v493, %v1410
    %v1418 = vmul.f32 %v1414, 0.5
    %v1419 = vmul.f32 %v1415, 0.5
    %v1420 = vmul.f32 %v1416, 0.5
    %v1421 = vtanh.pop %v1418
    %v1422 = vtanh.pop %v1419
    %v1423 = vtanh.pop %v1420
    %v1424 = vmul.f32 %v1421, 0.5
    %v1425 = vmul.f32 %v1422, 0.5
    %v1426 = vmul.f32 %v1423, 0.5
    %v1427 = vadd.f32 %v1424, 0.5
    %v1428 = vadd.f32 %v1425, 0.5
    %v1429 = vadd.f32 %v1426, 0.5
    %v1430 = vtanh.pop %v1417
    %v1431 = vmul.f32 %v1428, %v1328
    %v1432 = vmul.f32 %v1427, %v1430
    %v1433 = vadd.f32 %v1431, %v1432
    %v1434 = vtanh.pop %v1433
    %v1435 = vmul.f32 %v1429, %v1434
    %v1436 = vpack.c.bf16 %v1435, %v1435
    %1437 = vmatprep.subr.bf16.mxu0 %v954
    %1438 = vmatpush1.bf16.msra.mxu0 %v953
    %1439 = vmatprep.subr.bf16.mxu0 %v958
    %1440 = vmatpush1.bf16.msra.mxu0 %v957
    %1441 = vmatprep.subr.bf16.mxu0 %v962
    %1442 = vmatpush1.bf16.msra.mxu0 %v961
    %1443 = vmatprep.subr.bf16.mxu0 %v966
    %1444 = vmatpush1.bf16.msra.mxu0 %v965
    %1445 = vmatprep.subr.bf16.mxu0 %v970
    %1446 = vmatpush1.bf16.msra.mxu0 %v969
    %1447 = vmatprep.subr.bf16.mxu0 %v974
    %1448 = vmatpush1.bf16.msra.mxu0 %v973
    %1449 = vmatprep.subr.bf16.mxu0 %v978
    %1450 = vmatpush1.bf16.msra.mxu0 %v977
    %1451 = vmatprep.subr.bf16.mxu0 %v982
    %1452 = vmatpush1.bf16.msra.mxu0 %v981
    %1453 = vmatprep.subr.bf16.mxu0 0
    %1454 = vmatpush1.bf16.msra.mxu0 0
    %1455 = vmatprep.subr.bf16.mxu0 0
    %1456 = vmatpush1.bf16.msra.mxu0 0
    %1457 = vmatprep.subr.bf16.mxu0 0
    %1458 = vmatpush1.bf16.msra.mxu0 0
    %1459 = vmatprep.subr.bf16.mxu0 0
    %1460 = vmatpush1.bf16.msra.mxu0 0
    %1461 = vmatprep.subr.bf16.mxu0 0
    %1462 = vmatpush1.bf16.msra.mxu0 0
    %1463 = vmatprep.subr.bf16.mxu0 0
    %1464 = vmatpush1.bf16.msra.mxu0 0
    %1465 = vmatprep.subr.bf16.mxu0 0
    %1466 = vmatpush1.bf16.msra.mxu0 0
    %1467 = vmatprep.subr.bf16.mxu0 0
    %1468 = vmatpush1.bf16.msra.mxu0 0
    %1469 = vmatprep.mubr.bf16.mxu0 0
    %1470 = vmatmul.mubr.bf16.gmra.mrb[0].mxu0 %v1436
    %v1471 = vpop.f32.mrb[0].mxu0
    %v1472 = vadd.f32 0.0, %v1471
    %v1473 = vpop.f32.mrb[0].mxu0
    %v1474 = vadd.f32 0.0, %v1473
    %v1475 = vpop.f32.mrb[0].mxu0
    %v1476 = vpop.f32.mrb[0].mxu0
    %1477 = vdwg.mxu0
    %1478 = vmatprep.subr.bf16.mxu0 %v956
    %1479 = vmatpush1.bf16.msra.mxu0 %v955
    %1480 = vmatprep.subr.bf16.mxu0 %v960
    %1481 = vmatpush1.bf16.msra.mxu0 %v959
    %1482 = vmatprep.subr.bf16.mxu0 %v964
    %1483 = vmatpush1.bf16.msra.mxu0 %v963
    %1484 = vmatprep.subr.bf16.mxu0 %v968
    %1485 = vmatpush1.bf16.msra.mxu0 %v967
    %1486 = vmatprep.subr.bf16.mxu0 %v972
    %1487 = vmatpush1.bf16.msra.mxu0 %v971
    %1488 = vmatprep.subr.bf16.mxu0 %v976
    %1489 = vmatpush1.bf16.msra.mxu0 %v975
    %1490 = vmatprep.subr.bf16.mxu0 %v980
    %1491 = vmatpush1.bf16.msra.mxu0 %v979
    %1492 = vmatprep.subr.bf16.mxu0 %v984
    %1493 = vmatpush1.bf16.msra.mxu0 %v983
    %1494 = vmatprep.subr.bf16.mxu0 0
    %1495 = vmatpush1.bf16.msra.mxu0 0
    %1496 = vmatprep.subr.bf16.mxu0 0
    %1497 = vmatpush1.bf16.msra.mxu0 0
    %1498 = vmatprep.subr.bf16.mxu0 0
    %1499 = vmatpush1.bf16.msra.mxu0 0
    %1500 = vmatprep.subr.bf16.mxu0 0
    %1501 = vmatpush1.bf16.msra.mxu0 0
    %1502 = vmatprep.subr.bf16.mxu0 0
    %1503 = vmatpush1.bf16.msra.mxu0 0
    %1504 = vmatprep.subr.bf16.mxu0 0
    %1505 = vmatpush1.bf16.msra.mxu0 0
    %1506 = vmatprep.subr.bf16.mxu0 0
    %1507 = vmatpush1.bf16.msra.mxu0 0
    %1508 = vmatprep.subr.bf16.mxu0 0
    %1509 = vmatpush1.bf16.msra.mxu0 0
    %1510 = vmatprep.mubr.bf16.mxu0 0
    %1511 = vmatmul.mubr.bf16.gmra.mrb[0].mxu0 %v1436
    %v1512 = vpop.f32.mrb[0].mxu0
    %v1513 = vadd.f32 0.0, %v1512
    %v1514 = vpop.f32.mrb[0].mxu0
    %v1515 = vadd.f32 0.0, %v1514
    %v1516 = vpop.f32.mrb[0].mxu0
    %v1517 = vpop.f32.mrb[0].mxu0
    %1518 = vdwg.mxu0
    %v1519 = vadd.f32 %v540, %v1472
    %v1520 = vadd.f32 %v542, %v1474
    %v1521 = vadd.f32 %v581, %v1513
    %v1522 = vadd.f32 %v583, %v1515
    %v1523 = vmul.f32 %v1519, 0.5
    %v1524 = vmul.f32 %v1520, 0.5
    %v1525 = vmul.f32 %v1521, 0.5
    %v1526 = vtanh.pop %v1523
    %v1527 = vtanh.pop %v1524
    %v1528 = vtanh.pop %v1525
    %v1529 = vmul.f32 %v1526, 0.5
    %v1530 = vmul.f32 %v1527, 0.5
    %v1531 = vmul.f32 %v1528, 0.5
    %v1532 = vadd.f32 %v1529, 0.5
    %v1533 = vadd.f32 %v1530, 0.5
    %v1534 = vadd.f32 %v1531, 0.5
    %v1535 = vtanh.pop %v1522
    %v1536 = vmul.f32 %v1533, %v1433
    %v1537 = vmul.f32 %v1532, %v1535
    %v1538 = vadd.f32 %v1536, %v1537
    %v1539 = vtanh.pop %v1538
    %v1540 = vmul.f32 %v1534, %v1539
    %v1541 = vpack.c.bf16 %v1540, %v1540
    %1542 = vmatprep.subr.bf16.mxu0 %v954
    %1543 = vmatpush1.bf16.msra.mxu0 %v953
    %1544 = vmatprep.subr.bf16.mxu0 %v958
    %1545 = vmatpush1.bf16.msra.mxu0 %v957
    %1546 = vmatprep.subr.bf16.mxu0 %v962
    %1547 = vmatpush1.bf16.msra.mxu0 %v961
    %1548 = vmatprep.subr.bf16.mxu0 %v966
    %1549 = vmatpush1.bf16.msra.mxu0 %v965
    %1550 = vmatprep.subr.bf16.mxu0 %v970
    %1551 = vmatpush1.bf16.msra.mxu0 %v969
    %1552 = vmatprep.subr.bf16.mxu0 %v974
    %1553 = vmatpush1.bf16.msra.mxu0 %v973
    %1554 = vmatprep.subr.bf16.mxu0 %v978
    %1555 = vmatpush1.bf16.msra.mxu0 %v977
    %1556 = vmatprep.subr.bf16.mxu0 %v982
    %1557 = vmatpush1.bf16.msra.mxu0 %v981
    %1558 = vmatprep.subr.bf16.mxu0 0
    %1559 = vmatpush1.bf16.msra.mxu0 0
    %1560 = vmatprep.subr.bf16.mxu0 0
    %1561 = vmatpush1.bf16.msra.mxu0 0
    %1562 = vmatprep.subr.bf16.mxu0 0
    %1563 = vmatpush1.bf16.msra.mxu0 0
    %1564 = vmatprep.subr.bf16.mxu0 0
    %1565 = vmatpush1.bf16.msra.mxu0 0
    %1566 = vmatprep.subr.bf16.mxu0 0
    %1567 = vmatpush1.bf16.msra.mxu0 0
    %1568 = vmatprep.subr.bf16.mxu0 0
    %1569 = vmatpush1.bf16.msra.mxu0 0
    %1570 = vmatprep.subr.bf16.mxu0 0
    %1571 = vmatpush1.bf16.msra.mxu0 0
    %1572 = vmatprep.subr.bf16.mxu0 0
    %1573 = vmatpush1.bf16.msra.mxu0 0
    %1574 = vmatprep.mubr.bf16.mxu0 0
    %1575 = vmatmul.mubr.bf16.gmra.mrb[0].mxu0 %v1541
    %v1576 = vpop.f32.mrb[0].mxu0
    %v1577 = vadd.f32 0.0, %v1576
    %v1578 = vpop.f32.mrb[0].mxu0
    %v1579 = vadd.f32 0.0, %v1578
    %v1580 = vpop.f32.mrb[0].mxu0
    %v1581 = vpop.f32.mrb[0].mxu0
    %1582 = vdwg.mxu0
    %1583 = vmatprep.subr.bf16.mxu0 %v956
    %1584 = vmatpush1.bf16.msra.mxu0 %v955
    %1585 = vmatprep.subr.bf16.mxu0 %v960
    %1586 = vmatpush1.bf16.msra.mxu0 %v959
    %1587 = vmatprep.subr.bf16.mxu0 %v964
    %1588 = vmatpush1.bf16.msra.mxu0 %v963
    %1589 = vmatprep.subr.bf16.mxu0 %v968
    %1590 = vmatpush1.bf16.msra.mxu0 %v967
    %1591 = vmatprep.subr.bf16.mxu0 %v972
    %1592 = vmatpush1.bf16.msra.mxu0 %v971
    %1593 = vmatprep.subr.bf16.mxu0 %v976
    %1594 = vmatpush1.bf16.msra.mxu0 %v975
    %1595 = vmatprep.subr.bf16.mxu0 %v980
    %1596 = vmatpush1.bf16.msra.mxu0 %v979
    %1597 = vmatprep.subr.bf16.mxu0 %v984
    %1598 = vmatpush1.bf16.msra.mxu0 %v983
    %1599 = vmatprep.subr.bf16.mxu0 0
    %1600 = vmatpush1.bf16.msra.mxu0 0
    %1601 = vmatprep.subr.bf16.mxu0 0
    %1602 = vmatpush1.bf16.msra.mxu0 0
    %1603 = vmatprep.subr.bf16.mxu0 0
    %1604 = vmatpush1.bf16.msra.mxu0 0
    %1605 = vmatprep.subr.bf16.mxu0 0
    %1606 = vmatpush1.bf16.msra.mxu0 0
    %1607 = vmatprep.subr.bf16.mxu0 0
    %1608 = vmatpush1.bf16.msra.mxu0 0
    %1609 = vmatprep.subr.bf16.mxu0 0
    %1610 = vmatpush1.bf16.msra.mxu0 0
    %1611 = vmatprep.subr.bf16.mxu0 0
    %1612 = vmatpush1.bf16.msra.mxu0 0
    %1613 = vmatprep.subr.bf16.mxu0 0
    %1614 = vmatpush1.bf16.msra.mxu0 0
    %1615 = vmatprep.mubr.bf16.mxu0 0
    %1616 = vmatmul.mubr.bf16.gmra.mrb[0].mxu0 %v1541
    %v1617 = vpop.f32.mrb[0].mxu0
    %v1618 = vadd.f32 0.0, %v1617
    %v1619 = vpop.f32.mrb[0].mxu0
    %v1620 = vadd.f32 0.0, %v1619
    %v1621 = vpop.f32.mrb[0].mxu0
    %v1622 = vpop.f32.mrb[0].mxu0
    %1623 = vdwg.mxu0
    %v1624 = vadd.f32 %v630, %v1577
    %v1625 = vadd.f32 %v632, %v1579
    %v1626 = vadd.f32 %v671, %v1618
    %v1627 = vadd.f32 %v673, %v1620
    %v1628 = vmul.f32 %v1624, 0.5
    %v1629 = vmul.f32 %v1625, 0.5
    %v1630 = vmul.f32 %v1626, 0.5
    %v1631 = vtanh.pop %v1628
    %v1632 = vtanh.pop %v1629
    %v1633 = vtanh.pop %v1630
    %v1634 = vmul.f32 %v1631, 0.5
    %v1635 = vmul.f32 %v1632, 0.5
    %v1636 = vmul.f32 %v1633, 0.5
    %v1637 = vadd.f32 %v1634, 0.5
    %v1638 = vadd.f32 %v1635, 0.5
    %v1639 = vadd.f32 %v1636, 0.5
    %v1640 = vtanh.pop %v1627
    %v1641 = vmul.f32 %v1638, %v1538
    %v1642 = vmul.f32 %v1637, %v1640
    %v1643 = vadd.f32 %v1641, %v1642
    %v1644 = vtanh.pop %v1643
    %v1645 = vmul.f32 %v1639, %v1644
    %v1646 = vpack.c.bf16 %v1645, %v1645
    %1647 = vmatprep.subr.bf16.mxu0 %v954
    %1648 = vmatpush1.bf16.msra.mxu0 %v953
    %1649 = vmatprep.subr.bf16.mxu0 %v958
    %1650 = vmatpush1.bf16.msra.mxu0 %v957
    %1651 = vmatprep.subr.bf16.mxu0 %v962
    %1652 = vmatpush1.bf16.msra.mxu0 %v961
    %1653 = vmatprep.subr.bf16.mxu0 %v966
    %1654 = vmatpush1.bf16.msra.mxu0 %v965
    %1655 = vmatprep.subr.bf16.mxu0 %v970
    %1656 = vmatpush1.bf16.msra.mxu0 %v969
    %1657 = vmatprep.subr.bf16.mxu0 %v974
    %1658 = vmatpush1.bf16.msra.mxu0 %v973
    %1659 = vmatprep.subr.bf16.mxu0 %v978
    %1660 = vmatpush1.bf16.msra.mxu0 %v977
    %1661 = vmatprep.subr.bf16.mxu0 %v982
    %1662 = vmatpush1.bf16.msra.mxu0 %v981
    %1663 = vmatprep.subr.bf16.mxu0 0
    %1664 = vmatpush1.bf16.msra.mxu0 0
    %1665 = vmatprep.subr.bf16.mxu0 0
    %1666 = vmatpush1.bf16.msra.mxu0 0
    %1667 = vmatprep.subr.bf16.mxu0 0
    %1668 = vmatpush1.bf16.msra.mxu0 0
    %1669 = vmatprep.subr.bf16.mxu0 0
    %1670 = vmatpush1.bf16.msra.mxu0 0
    %1671 = vmatprep.subr.bf16.mxu0 0
    %1672 = vmatpush1.bf16.msra.mxu0 0
    %1673 = vmatprep.subr.bf16.mxu0 0
    %1674 = vmatpush1.bf16.msra.mxu0 0
    %1675 = vmatprep.subr.bf16.mxu0 0
    %1676 = vmatpush1.bf16.msra.mxu0 0
    %1677 = vmatprep.subr.bf16.mxu0 0
    %1678 = vmatpush1.bf16.msra.mxu0 0
    %1679 = vmatprep.mubr.bf16.mxu0 0
    %1680 = vmatmul.mubr.bf16.gmra.mrb[0].mxu0 %v1646
    %v1681 = vpop.f32.mrb[0].mxu0
    %v1682 = vadd.f32 0.0, %v1681
    %v1683 = vpop.f32.mrb[0].mxu0
    %v1684 = vadd.f32 0.0, %v1683
    %v1685 = vpop.f32.mrb[0].mxu0
    %v1686 = vpop.f32.mrb[0].mxu0
    %1687 = vdwg.mxu0
    %1688 = vmatprep.subr.bf16.mxu0 %v956
    %1689 = vmatpush1.bf16.msra.mxu0 %v955
    %1690 = vmatprep.subr.bf16.mxu0 %v960
    %1691 = vmatpush1.bf16.msra.mxu0 %v959
    %1692 = vmatprep.subr.bf16.mxu0 %v964
    %1693 = vmatpush1.bf16.msra.mxu0 %v963
    %1694 = vmatprep.subr.bf16.mxu0 %v968
    %1695 = vmatpush1.bf16.msra.mxu0 %v967
    %1696 = vmatprep.subr.bf16.mxu0 %v972
    %1697 = vmatpush1.bf16.msra.mxu0 %v971
    %1698 = vmatprep.subr.bf16.mxu0 %v976
    %1699 = vmatpush1.bf16.msra.mxu0 %v975
    %1700 = vmatprep.subr.bf16.mxu0 %v980
    %1701 = vmatpush1.bf16.msra.mxu0 %v979
    %1702 = vmatprep.subr.bf16.mxu0 %v984
    %1703 = vmatpush1.bf16.msra.mxu0 %v983
    %1704 = vmatprep.subr.bf16.mxu0 0
    %1705 = vmatpush1.bf16.msra.mxu0 0
    %1706 = vmatprep.subr.bf16.mxu0 0
    %1707 = vmatpush1.bf16.msra.mxu0 0
    %1708 = vmatprep.subr.bf16.mxu0 0
    %1709 = vmatpush1.bf16.msra.mxu0 0
    %1710 = vmatprep.subr.bf16.mxu0 0
    %1711 = vmatpush1.bf16.msra.mxu0 0
    %1712 = vmatprep.subr.bf16.mxu0 0
    %1713 = vmatpush1.bf16.msra.mxu0 0
    %1714 = vmatprep.subr.bf16.mxu0 0
    %1715 = vmatpush1.bf16.msra.mxu0 0
    %1716 = vmatprep.subr.bf16.mxu0 0
    %1717 = vmatpush1.bf16.msra.mxu0 0
    %1718 = vmatprep.subr.bf16.mxu0 0
    %1719 = vmatpush1.bf16.msra.mxu0 0
    %1720 = vmatprep.mubr.bf16.mxu0 0
    %1721 = vmatmul.mubr.bf16.gmra.mrb[0].mxu0 %v1646
    %v1722 = vpop.f32.mrb[0].mxu0
    %v1723 = vadd.f32 0.0, %v1722
    %v1724 = vpop.f32.mrb[0].mxu0
    %v1725 = vadd.f32 0.0, %v1724
    %v1726 = vpop.f32.mrb[0].mxu0
    %v1727 = vpop.f32.mrb[0].mxu0
    %1728 = vdwg.mxu0
    %v1729 = vadd.f32 %v720, %v1682
    %v1730 = vadd.f32 %v722, %v1684
    %v1731 = vadd.f32 %v761, %v1723
    %v1732 = vadd.f32 %v763, %v1725
    %v1733 = vmul.f32 %v1729, 0.5
    %v1734 = vmul.f32 %v1730, 0.5
    %v1735 = vmul.f32 %v1731, 0.5
    %v1736 = vtanh.pop %v1733
    %v1737 = vtanh.pop %v1734
    %v1738 = vtanh.pop %v1735
    %v1739 = vmul.f32 %v1736, 0.5
    %v1740 = vmul.f32 %v1737, 0.5
    %v1741 = vmul.f32 %v1738, 0.5
    %v1742 = vadd.f32 %v1739, 0.5
    %v1743 = vadd.f32 %v1740, 0.5
    %v1744 = vadd.f32 %v1741, 0.5
    %v1745 = vtanh.pop %v1732
    %v1746 = vmul.f32 %v1743, %v1643
    %v1747 = vmul.f32 %v1742, %v1745
    %v1748 = vadd.f32 %v1746, %v1747
    %v1749 = vtanh.pop %v1748
    %v1750 = vmul.f32 %v1744, %v1749
    %v1751 = vpack.c.bf16 %v1750, %v1750
    %1752 = vmatprep.subr.bf16.mxu0 %v954
    %1753 = vmatpush1.bf16.msra.mxu0 %v953
    %1754 = vmatprep.subr.bf16.mxu0 %v958
    %1755 = vmatpush1.bf16.msra.mxu0 %v957
    %1756 = vmatprep.subr.bf16.mxu0 %v962
    %1757 = vmatpush1.bf16.msra.mxu0 %v961
    %1758 = vmatprep.subr.bf16.mxu0 %v966
    %1759 = vmatpush1.bf16.msra.mxu0 %v965
    %1760 = vmatprep.subr.bf16.mxu0 %v970
    %1761 = vmatpush1.bf16.msra.mxu0 %v969
    %1762 = vmatprep.subr.bf16.mxu0 %v974
    %1763 = vmatpush1.bf16.msra.mxu0 %v973
    %1764 = vmatprep.subr.bf16.mxu0 %v978
    %1765 = vmatpush1.bf16.msra.mxu0 %v977
    %1766 = vmatprep.subr.bf16.mxu0 %v982
    %1767 = vmatpush1.bf16.msra.mxu0 %v981
    %1768 = vmatprep.subr.bf16.mxu0 0
    %1769 = vmatpush1.bf16.msra.mxu0 0
    %1770 = vmatprep.subr.bf16.mxu0 0
    %1771 = vmatpush1.bf16.msra.mxu0 0
    %1772 = vmatprep.subr.bf16.mxu0 0
    %1773 = vmatpush1.bf16.msra.mxu0 0
    %1774 = vmatprep.subr.bf16.mxu0 0
    %1775 = vmatpush1.bf16.msra.mxu0 0
    %1776 = vmatprep.subr.bf16.mxu0 0
    %1777 = vmatpush1.bf16.msra.mxu0 0
    %1778 = vmatprep.subr.bf16.mxu0 0
    %1779 = vmatpush1.bf16.msra.mxu0 0
    %1780 = vmatprep.subr.bf16.mxu0 0
    %1781 = vmatpush1.bf16.msra.mxu0 0
    %1782 = vmatprep.subr.bf16.mxu0 0
    %1783 = vmatpush1.bf16.msra.mxu0 0
    %1784 = vmatprep.mubr.bf16.mxu0 0
    %1785 = vmatmul.mubr.bf16.gmra.mrb[0].mxu0 %v1751
    %v1786 = vpop.f32.mrb[0].mxu0
    %v1787 = vadd.f32 0.0, %v1786
    %v1788 = vpop.f32.mrb[0].mxu0
    %v1789 = vadd.f32 0.0, %v1788
    %v1790 = vpop.f32.mrb[0].mxu0
    %v1791 = vpop.f32.mrb[0].mxu0
    %1792 = vdwg.mxu0
    %1793 = vmatprep.subr.bf16.mxu0 %v956
    %1794 = vmatpush1.bf16.msra.mxu0 %v955
    %1795 = vmatprep.subr.bf16.mxu0 %v960
    %1796 = vmatpush1.bf16.msra.mxu0 %v959
    %1797 = vmatprep.subr.bf16.mxu0 %v964
    %1798 = vmatpush1.bf16.msra.mxu0 %v963
    %1799 = vmatprep.subr.bf16.mxu0 %v968
    %1800 = vmatpush1.bf16.msra.mxu0 %v967
    %1801 = vmatprep.subr.bf16.mxu0 %v972
    %1802 = vmatpush1.bf16.msra.mxu0 %v971
    %1803 = vmatprep.subr.bf16.mxu0 %v976
    %1804 = vmatpush1.bf16.msra.mxu0 %v975
    %1805 = vmatprep.subr.bf16.mxu0 %v980
    %1806 = vmatpush1.bf16.msra.mxu0 %v979
    %1807 = vmatprep.subr.bf16.mxu0 %v984
    %1808 = vmatpush1.bf16.msra.mxu0 %v983
    %1809 = vmatprep.subr.bf16.mxu0 0
    %1810 = vmatpush1.bf16.msra.mxu0 0
    %1811 = vmatprep.subr.bf16.mxu0 0
    %1812 = vmatpush1.bf16.msra.mxu0 0
    %1813 = vmatprep.subr.bf16.mxu0 0
    %1814 = vmatpush1.bf16.msra.mxu0 0
    %1815 = vmatprep.subr.bf16.mxu0 0
    %1816 = vmatpush1.bf16.msra.mxu0 0
    %1817 = vmatprep.subr.bf16.mxu0 0
    %1818 = vmatpush1.bf16.msra.mxu0 0
    %1819 = vmatprep.subr.bf16.mxu0 0
    %1820 = vmatpush1.bf16.msra.mxu0 0
    %1821 = vmatprep.subr.bf16.mxu0 0
    %1822 = vmatpush1.bf16.msra.mxu0 0
    %1823 = vmatprep.subr.bf16.mxu0 0
    %1824 = vmatpush1.bf16.msra.mxu0 0
    %1825 = vmatprep.mubr.bf16.mxu0 0
    %1826 = vmatmul.mubr.bf16.gmra.mrb[0].mxu0 %v1751
    %v1827 = vpop.f32.mrb[0].mxu0
    %v1828 = vadd.f32 0.0, %v1827
    %v1829 = vpop.f32.mrb[0].mxu0
    %v1830 = vadd.f32 0.0, %v1829
    %v1831 = vpop.f32.mrb[0].mxu0
    %v1832 = vpop.f32.mrb[0].mxu0
    %1833 = vdwg.mxu0
    %v1834 = vadd.f32 %v810, %v1787
    %v1835 = vadd.f32 %v812, %v1789
    %v1836 = vadd.f32 %v851, %v1828
    %v1837 = vadd.f32 %v853, %v1830
    %v1838 = vmul.f32 %v1834, 0.5
    %v1839 = vmul.f32 %v1835, 0.5
    %v1840 = vmul.f32 %v1836, 0.5
    %v1841 = vtanh.pop %v1838
    %v1842 = vtanh.pop %v1839
    %v1843 = vtanh.pop %v1840
    %v1844 = vmul.f32 %v1841, 0.5
    %v1845 = vmul.f32 %v1842, 0.5
    %v1846 = vmul.f32 %v1843, 0.5
    %v1847 = vadd.f32 %v1844, 0.5
    %v1848 = vadd.f32 %v1845, 0.5
    %v1849 = vadd.f32 %v1846, 0.5
    %v1850 = vtanh.pop %v1837
    %v1851 = vmul.f32 %v1848, %v1748
    %v1852 = vmul.f32 %v1847, %v1850
    %v1853 = vadd.f32 %v1851, %v1852
    %v1854 = vtanh.pop %v1853
    %v1855 = vmul.f32 %v1849, %v1854
    %v1856 = vpack.c.bf16 %v1855, %v1855
    %v1857 = vld [vmem:[#allocation5] sm:$0xf]
    %v1858 = vld [vmem:[#allocation5 + $0x4] sm:$0xf]
    %v1859 = vld [vmem:[#allocation5 + $0x8] sm:$0xf]
    %v1860 = vld [vmem:[#allocation5 + $0xc] sm:$0xf]
    %v1861 = vld [vmem:[#allocation5 + $0x10] sm:$0xf]
    %v1862 = vld [vmem:[#allocation5 + $0x14] sm:$0xf]
    %v1863 = vld [vmem:[#allocation5 + $0x18] sm:$0xf]
    %v1864 = vld [vmem:[#allocation5 + $0x1c] sm:$0xf]
    %v1865 = vld [vmem:[#allocation5 + $0x20] sm:$0xf]
    %v1866 = vld [vmem:[#allocation5 + $0x24] sm:$0xf]
    %v1867 = vld [vmem:[#allocation5 + $0x28] sm:$0xf]
    %v1868 = vld [vmem:[#allocation5 + $0x2c] sm:$0xf]
    %v1869 = vld [vmem:[#allocation5 + $0x30] sm:$0xf]
    %v1870 = vld [vmem:[#allocation5 + $0x34] sm:$0xf]
    %v1871 = vld [vmem:[#allocation5 + $0x38] sm:$0xf]
    %v1872 = vld [vmem:[#allocation5 + $0x3c] sm:$0xf]
    %v1873 = vld [vmem:[%s5] sm:$0x1]
    %v1875 = vlaneseq
    %v1876 = vshrl.u32 %v1875, 7
    %v1877 = vsub.s32 0, %v1876
    %v1878 = vrot.slane %v1873, %v1877
    %v1896 = vunpack.c.l.b16 %v1857
    %v1897 = vunpack.c.l.b16 %v1858
    %v1898 = vunpack.c.l.b16 %v1859
    %v1899 = vunpack.c.l.b16 %v1860
    %v1900 = vunpack.c.l.b16 %v1861
    %v1901 = vunpack.c.l.b16 %v1862
    %v1902 = vunpack.c.l.b16 %v1863
    %v1903 = vunpack.c.l.b16 %v1864
    %v1904 = vunpack.c.l.b16 %v1865
    %v1905 = vunpack.c.l.b16 %v1866
    %v1906 = vunpack.c.l.b16 %v1867
    %v1907 = vunpack.c.l.b16 %v1868
    %v1908 = vunpack.c.l.b16 %v1869
    %v1909 = vunpack.c.l.b16 %v1870
    %v1910 = vunpack.c.l.b16 %v1871
    %v1911 = vunpack.c.l.b16 %v1872
    %v1912 = vpack.c.b16 %v1897, %v1896
    %v1913 = vpack.c.b16 %v1899, %v1898
    %v1914 = vpack.c.b16 %v1901, %v1900
    %v1915 = vpack.c.b16 %v1903, %v1902
    %v1916 = vpack.c.b16 %v1905, %v1904
    %v1917 = vpack.c.b16 %v1907, %v1906
    %v1918 = vpack.c.b16 %v1909, %v1908
    %v1919 = vpack.c.b16 %v1911, %v1910
    %1928 = vmatprep.subr.bf16.mxu0 0
    %1929 = vmatpush1.bf16.msra.mxu0 %v1912
    %1930 = vmatprep.subr.bf16.mxu0 0
    %1931 = vmatpush1.bf16.msra.mxu0 %v1913
    %1932 = vmatprep.subr.bf16.mxu0 0
    %1933 = vmatpush1.bf16.msra.mxu0 %v1914
    %1934 = vmatprep.subr.bf16.mxu0 0
    %1935 = vmatpush1.bf16.msra.mxu0 %v1915
    %1936 = vmatprep.subr.bf16.mxu0 0
    %1937 = vmatpush1.bf16.msra.mxu0 %v1916
    %1938 = vmatprep.subr.bf16.mxu0 0
    %1939 = vmatpush1.bf16.msra.mxu0 %v1917
    %1940 = vmatprep.subr.bf16.mxu0 0
    %1941 = vmatpush1.bf16.msra.mxu0 %v1918
    %1942 = vmatprep.subr.bf16.mxu0 0
    %1943 = vmatpush1.bf16.msra.mxu0 %v1919
    %1944 = vmatprep.subr.bf16.mxu0 0
    %1945 = vmatpush1.bf16.msra.mxu0 0
    %1946 = vmatprep.subr.bf16.mxu0 0
    %1947 = vmatpush1.bf16.msra.mxu0 0
    %1948 = vmatprep.subr.bf16.mxu0 0
    %1949 = vmatpush1.bf16.msra.mxu0 0
    %1950 = vmatprep.subr.bf16.mxu0 0
    %1951 = vmatpush1.bf16.msra.mxu0 0
    %1952 = vmatprep.subr.bf16.mxu0 0
    %1953 = vmatpush1.bf16.msra.mxu0 0
    %1954 = vmatprep.subr.bf16.mxu0 0
    %1955 = vmatpush1.bf16.msra.mxu0 0
    %1956 = vmatprep.subr.bf16.mxu0 0
    %1957 = vmatpush1.bf16.msra.mxu0 0
    %1958 = vmatprep.subr.bf16.mxu0 0
    %1959 = vmatpush1.bf16.msra.mxu0 0
    %1960 = vmatprep.mubr.bf16.mxu0 0
    %1961 = vmatmul.mubr.bf16.gmra.mrb[0].mxu0 %v1856
    %v1962 = vpop.f32.mrb[0].mxu0
    %v1963 = vadd.f32 %v1878, %v1962
    %v1964 = vpop.f32.mrb[0].mxu0
    %v1965 = vpop.f32.mrb[0].mxu0
    %v1966 = vpop.f32.mrb[0].mxu0
    %1967 = vdwg.mxu0
    %vm1968 = vcmask 984064
    %1969 = vst.msk [vmem:[#allocation7] sm:$0x3] %vm1968, %v1963
    // Predicated region
    $region34: #{model_forward.1} parent=1 // pred_check
      _
    $region35: #{model_forward.1} parent=1 // pred_check_branch
      %1971 = sbr.rel (0) target = $region37
    $region36: #{model_forward.1} parent=1 // pred_region
      %s1973 = ssub.s32 32, 32
      %1974 = vsyncadd [#allocation4], %s1973
      %s1976 = sshll.u32 [#allocation7], 4
      %s1977 = int_to_ptr.vmem [resolvable:$true] %s1976
      %1979 = dma.vmem_to_hbm [thread:$0]  %s1977, 32, %s6, [#allocation4]
    $region37: #{model_forward.1} parent=1 // pred_fallthru
      _
    // Predicated region
    $region38: #{model_forward.1} parent=1 // pred_check
      _
    $region39: #{model_forward.1} parent=1 // pred_check_branch
      %1981 = sbr.rel (0) target = $region41
    $region40: #{model_forward.1} parent=1 // pred_region
      %1982 = dma.done [#allocation4], 32
    $region41: #{model_forward.1} parent=1 // pred_fallthru
      _
    %1983 = vsyncpa [#allocation3], 1
    %1984 = vsyncpa [#allocation6], 1
    %1985 = vsyncpa [#allocation4], 1

</llo_original>
